<compile_context>
chip_gen: v6e
topology: v6e:2x2x1
jax: 0.10.0
libtpu: 0.0.40
codegen_flags: <defaults>
</compile_context>

<pallas_src>
import jax
import jax.numpy as jnp
from jax.experimental import pallas as pl
from jax.experimental.pallas import tpu as pltpu

LATENT_DIM = 32
HIDDEN = 128
OUT_FEATURES = 3 * 32 * 32  # 3072
TILE_B = 512                # batch tile; fits scoped-VMEM defaults on v5e/v6e/v7x


def _round_up(x, m):
    return ((x + m - 1) // m) * m


def generator_kernel(z_ref, w1_ref, b1_ref, w2_ref, b2_ref, o_ref):
    # First linear + ReLU.  Tiny (K=32) matmul -> keep it f32 for accuracy.
    h = jnp.dot(z_ref[...], w1_ref[...], preferred_element_type=jnp.float32)
    h = jnp.maximum(h + b1_ref[...], 0.0)            # (TILE_B,128) + (1,128) bcast, ReLU
    # Second linear + Tanh.  bf16 operands on the MXU, f32 accumulation.
    y = jnp.dot(h.astype(jnp.bfloat16), w2_ref[...],
                preferred_element_type=jnp.float32)
    y = y + b2_ref[...]                               # (TILE_B,3072) + (1,3072) bcast
    o_ref[...] = jnp.tanh(y).astype(o_ref.dtype)


def generator_forward(z, w1, b1, w2, b2, *, tile_b=TILE_B, out_dtype=jnp.bfloat16):
    """z: (B, latent_dim) f32 -> images (B, 3, 32, 32) in out_dtype (default bf16).

    w1/b1 are f32; w2 is bf16 (in_features, out_features); b2 is an f32 row vector.
    Pass out_dtype=jnp.float32 for exact-dtype parity with the torch module.
    """
    B, latent = z.shape

    # Batch tile: multiple of 8 (sublane), capped at tile_b.
    tb = min(tile_b, _round_up(B, 8))
    # Ensure >=2 grid steps when possible so v7x megacore can shard the batch;
    # a length-1 grid would leave the second TensorCore idle.
    if B > 8 and pl.cdiv(_round_up(B, 8), tb) < 2:
        tb = _round_up(pl.cdiv(B, 2), 8)
    tb = max(tb, 8)
    # Pad B to a whole number of tiles so every BlockSpec dim divides evenly.
    Bp = _round_up(B, tb)
    if Bp != B:
        z = jnp.pad(z, ((0, Bp - B), (0, 0)))

    # Grid-invariant operands: single-buffered (no benefit from double-buffering).
    resident = pl.Buffered(1)

    flat = pl.pallas_call(
        generator_kernel,
        out_shape=jax.ShapeDtypeStruct((Bp, OUT_FEATURES), out_dtype),
        grid=(Bp // tb,),
        in_specs=[
            pl.BlockSpec((tb, latent), lambda i: (i, 0)),               # z tile
            pl.BlockSpec((latent, HIDDEN), lambda i: (0, 0),
                         pipeline_mode=resident),                       # w1 (resident)
            pl.BlockSpec((1, HIDDEN), lambda i: (0, 0),
                         pipeline_mode=resident),                       # b1 (resident)
            pl.BlockSpec((HIDDEN, OUT_FEATURES), lambda i: (0, 0),
                         pipeline_mode=resident),                       # w2 (resident)
            pl.BlockSpec((1, OUT_FEATURES), lambda i: (0, 0),
                         pipeline_mode=resident),                       # b2 (resident)
        ],
        out_specs=pl.BlockSpec((tb, OUT_FEATURES), lambda i: (i, 0)),
        compiler_params=pltpu.CompilerParams(
            dimension_semantics=("parallel",),   # shard batch tiles across TCs on v7x
            vmem_limit_bytes=48 * 1024 * 1024,   # room for f32 out / bigger tiles on v5e
        ),
    )(z, w1, b1, w2, b2)

    # Keep the lane-dense (B, 3072) slab until the last moment; this reshape is
    # free in XLA and matches torch's .view(-1, 3, 32, 32).
    return flat[:B].reshape(B, 3, 32, 32)


def init_params(key, latent_dim=LATENT_DIM):
    """Deterministic init mirroring nn.Linear's U(-1/sqrt(fan_in), 1/sqrt(fan_in)).

    Weights are stored transposed vs. torch ((in, out)).  w1 stays f32 (tiny, keeps
    the first matmul accurate); w2 is bf16 for the MXU; biases stay f32 and are
    added post-accumulation.
    """
    k1, k2, k3, k4 = jax.random.split(key, 4)
    lim1 = 1.0 / jnp.sqrt(jnp.float32(latent_dim))
    lim2 = 1.0 / jnp.sqrt(jnp.float32(HIDDEN))
    w1 = jax.random.uniform(k1, (latent_dim, HIDDEN), jnp.float32, -lim1, lim1)
    b1 = jax.random.uniform(k2, (1, HIDDEN), jnp.float32, -lim1, lim1)
    w2 = jax.random.uniform(k3, (HIDDEN, OUT_FEATURES), jnp.float32, -lim2, lim2)
    b2 = jax.random.uniform(k4, (1, OUT_FEATURES), jnp.float32, -lim2, lim2)
    return w1, b1, w2.astype(jnp.bfloat16), b2


if __name__ == "__main__":
    key = jax.random.PRNGKey(0)
    pkey, zkey = jax.random.split(key)
    w1, b1, w2, b2 = init_params(pkey)

    batch = 8  # small but a full sublane; real GAN batches (>=256) fill the tiles
    z = jax.random.normal(zkey, (batch, LATENT_DIM), jnp.float32)

    # Default path: bf16 output (halves HBM writeback; the kernel is writeback-bound).
    imgs = generator_forward(z, w1, b1, w2, b2)
    jax.block_until_ready(imgs)
    assert imgs.shape == (batch, 3, 32, 32)
    assert imgs.dtype == jnp.bfloat16

    # Pure-JAX reference of the same math (f32 first matmul, bf16 second, f32 acc).
    ref_h = jnp.maximum(jnp.dot(z, w1, preferred_element_type=jnp.float32) + b1, 0.0)
    ref_y = jnp.dot(ref_h.astype(jnp.bfloat16), w2,
                    preferred_element_type=jnp.float32) + b2
    ref = jnp.tanh(ref_y).reshape(batch, 3, 32, 32)
    err = jnp.max(jnp.abs(imgs.astype(jnp.float32) - ref))
    assert err < 2e-2, float(err)

    # f32-output path for exact dtype parity with the torch module.
    imgs_f32 = generator_forward(z, w1, b1, w2, b2, out_dtype=jnp.float32)
    jax.block_until_ready(imgs_f32)
    assert imgs_f32.shape == (batch, 3, 32, 32)
    assert imgs_f32.dtype == jnp.float32
    err32 = jnp.max(jnp.abs(imgs_f32 - ref))
    assert err32 < 1e-2, float(err32)

    print("KERNEL_OK")
</pallas_src>

<mosaic_0001>
module attributes {stable_mosaic.version = 11 : i64} {
  func.func @generator_kernel(%arg0: i32, %arg1: memref<8x32xf32, #tpu.memory_space<vmem>>, %arg2: memref<32x128xf32, #tpu.memory_space<vmem>>, %arg3: memref<1x128xf32, #tpu.memory_space<vmem>>, %arg4: memref<128x3072xbf16, #tpu.memory_space<vmem>>, %arg5: memref<1x3072xf32, #tpu.memory_space<vmem>>, %arg6: memref<8x3072xbf16, #tpu.memory_space<vmem>>) attributes {dimension_semantics = [#tpu.dimension_semantics<parallel>], iteration_bounds = array<i64: 1>, scalar_prefetch = 0 : i64, scratch_operands = 0 : i64, tpu.core_type = #tpu.core_type<tc>, window_params = [{transform_indices = @transform_0, window_bounds = array<i64: 8, 32>}, {pipeline_mode = #tpu.pipeline_mode<synchronous>, transform_indices = @transform_1, window_bounds = array<i64: 32, 128>}, {pipeline_mode = #tpu.pipeline_mode<synchronous>, transform_indices = @transform_2, window_bounds = array<i64: 1, 128>}, {pipeline_mode = #tpu.pipeline_mode<synchronous>, transform_indices = @transform_3, window_bounds = array<i64: 128, 3072>}, {pipeline_mode = #tpu.pipeline_mode<synchronous>, transform_indices = @transform_4, window_bounds = array<i64: 1, 3072>}, {transform_indices = @transform_5, window_bounds = array<i64: 8, 3072>}]} {
    %c0 = arith.constant 0 : index
    %c0_0 = arith.constant 0 : index
    %0 = vector.load %arg1[%c0, %c0_0] : memref<8x32xf32, #tpu.memory_space<vmem>>, vector<8x32xf32>
    %c0_1 = arith.constant 0 : index
    %c0_2 = arith.constant 0 : index
    %1 = vector.load %arg2[%c0_1, %c0_2] : memref<32x128xf32, #tpu.memory_space<vmem>>, vector<32x128xf32>
    %cst = arith.constant dense<0.000000e+00> : vector<8x128xf32>
    %2 = tpu.matmul %0, %1, %cst {dimension_numbers = #tpu.dot_dimension_numbers<[1], [0], [0], [1], [0, 0, 1, 1], [], []>} : vector<8x32xf32>, vector<32x128xf32>, vector<8x128xf32> -> vector<8x128xf32>
    %c0_3 = arith.constant 0 : index
    %c0_4 = arith.constant 0 : index
    %3 = vector.load %arg3[%c0_3, %c0_4] : memref<1x128xf32, #tpu.memory_space<vmem>>, vector<1x128xf32>
    %4 = vector.broadcast %3 : vector<1x128xf32> to vector<8x128xf32>
    %5 = arith.addf %2, %4 : vector<8x128xf32>
    %cst_5 = arith.constant 0.000000e+00 : f32
    %6 = vector.broadcast %cst_5 : f32 to vector<8x128xf32>
    %7 = arith.maximumf %5, %6 : vector<8x128xf32>
    %8 = arith.truncf %7 : vector<8x128xf32> to vector<8x128xbf16>
    %c0_6 = arith.constant 0 : index
    %c0_7 = arith.constant 0 : index
    %9 = vector.load %arg4[%c0_6, %c0_7] : memref<128x3072xbf16, #tpu.memory_space<vmem>>, vector<128x3072xbf16>
    %cst_8 = arith.constant dense<0.000000e+00> : vector<8x3072xf32>
    %10 = tpu.matmul %8, %9, %cst_8 {dimension_numbers = #tpu.dot_dimension_numbers<[1], [0], [0], [1], [0, 0, 1, 1], [], []>} : vector<8x128xbf16>, vector<128x3072xbf16>, vector<8x3072xf32> -> vector<8x3072xf32>
    %c0_9 = arith.constant 0 : index
    %c0_10 = arith.constant 0 : index
    %11 = vector.load %arg5[%c0_9, %c0_10] : memref<1x3072xf32, #tpu.memory_space<vmem>>, vector<1x3072xf32>
    %12 = vector.broadcast %11 : vector<1x3072xf32> to vector<8x3072xf32>
    %13 = arith.addf %10, %12 : vector<8x3072xf32>
    %14 = math.tanh %13 : vector<8x3072xf32>
    %15 = arith.truncf %14 : vector<8x3072xf32> to vector<8x3072xbf16>
    %c0_11 = arith.constant 0 : index
    %c0_12 = arith.constant 0 : index
    %16 = vector.load %arg6[%c0_11, %c0_12] : memref<8x3072xbf16, #tpu.memory_space<vmem>>, vector<8x3072xbf16>
    tpu.vector_store %arg6[%c0_11, %c0_12], %15 {strides = array<i32>} : memref<8x3072xbf16, #tpu.memory_space<vmem>>, vector<8x3072xbf16>,
    return
  }
  func.func @transform_0(%arg0: i32) -> (i32, i32) {
    %c0_i32 = arith.constant 0 : i32
    %c0_i32_0 = arith.constant 0 : i32
    return %arg0, %c0_i32 : i32, i32
  }
  func.func @transform_1(%arg0: i32) -> (i32, i32) {
    %c0_i32 = arith.constant 0 : i32
    %c0_i32_0 = arith.constant 0 : i32
    %c0_i32_1 = arith.constant 0 : i32
    return %c0_i32, %c0_i32_0 : i32, i32
  }
  func.func @transform_2(%arg0: i32) -> (i32, i32) {
    %c0_i32 = arith.constant 0 : i32
    %c0_i32_0 = arith.constant 0 : i32
    %c0_i32_1 = arith.constant 0 : i32
    return %c0_i32, %c0_i32_0 : i32, i32
  }
  func.func @transform_3(%arg0: i32) -> (i32, i32) {
    %c0_i32 = arith.constant 0 : i32
    %c0_i32_0 = arith.constant 0 : i32
    %c0_i32_1 = arith.constant 0 : i32
    return %c0_i32, %c0_i32_0 : i32, i32
  }
  func.func @transform_4(%arg0: i32) -> (i32, i32) {
    %c0_i32 = arith.constant 0 : i32
    %c0_i32_0 = arith.constant 0 : i32
    %c0_i32_1 = arith.constant 0 : i32
    return %c0_i32, %c0_i32_0 : i32, i32
  }
  func.func @transform_5(%arg0: i32) -> (i32, i32) {
    %c0_i32 = arith.constant 0 : i32
    %c0_i32_0 = arith.constant 0 : i32
    return %arg0, %c0_i32 : i32, i32
  }
}

</mosaic_0001>

<llo_original>
// kernel: tpu_custom_call.1
$region0: #{tpu_custom_call.1}
  #allocation0 [shape = 'u32[]', space=smem, size = 0x4, offset = 0x4, fixed_abs, tag = 'smem constant byte address 0x4 - core index']
  #allocation1 [shape = 'u32[144,128]{1,0:T(1,128)}', space=vmem, size = 0x12000, scoped, tag = 'internal scratch']
  %s0 = inlined_call_operand.hbm [shape: f32[8,32], index: 0, kind: input, shape index: {}]
  %s1 = inlined_call_operand.hbm [shape: f32[32,128], index: 1, kind: input, shape index: {}]
  %s2 = inlined_call_operand.vmem [shape: f32[1,128], index: 2, kind: input, shape index: {}]
  %s3 = inlined_call_operand.hbm [shape: bf16[128,3072], index: 3, kind: input, shape index: {}]
  %s4 = inlined_call_operand.hbm [shape: f32[1,3072], index: 4, kind: input, shape index: {}]
  %s5 = inlined_call_operand.hbm [shape: bf16[8,3072], index: 5, kind: output, shape index: {}]
  %s6 = sld [smem:[#allocation0]]
  $region46: #{tpu_custom_call.1} parent=0
    _
  %s8 = ssub.s32 1, %s6
  %s9 = scalar_select 0, %s8, %s6
  $region1: #{tpu_custom_call.1} parent=0
    #allocation2 [shape = 'u8[4096]{0}', space=vmem, size = 0x1000, scoped, tag = 'input window, operand 0, single buffered']
    #allocation3 [shape = 's32[1]{0}', space=sflag, size = 0x4, scoped, tag = 'scoped memory for tpu_custom_call.1']
    #allocation4 [shape = 's32[1]{0}', space=sflag, size = 0x4, scoped, tag = 'scoped memory for tpu_custom_call.1']
    #allocation5 [shape = 'u8[16384]{0}', space=vmem, size = 0x4000, scoped, tag = 'input window, operand 1, single buffered']
    #allocation6 [shape = 's32[1]{0}', space=sflag, size = 0x4, scoped, tag = 'scoped memory for tpu_custom_call.1']
    #allocation7 [shape = 'u8[786432]{0}', space=vmem, size = 0xc0000, scoped, tag = 'input window, operand 3, single buffered']
    #allocation8 [shape = 'u8[12288]{0}', space=vmem, size = 0x3000, scoped, tag = 'input window, operand 4, single buffered']
    #allocation9 [shape = 's32[1]{0}', space=sflag, size = 0x4, scoped, tag = 'scoped memory for tpu_custom_call.1']
    #allocation10 [shape = 'u8[49152]{0}', space=vmem, size = 0xc000, scoped, tag = 'output window, operand 0, single buffered']
    %10 = vsyncpa [#allocation3], 0
    %11 = vsyncpa [#allocation6], 0
    %12 = vsyncpa [#allocation9], 0
    %13 = vsyncpa [#allocation4], 0
    // Predicated region
    $region2: #{tpu_custom_call.1} parent=1 // pred_check
      _
    $region3: #{tpu_custom_call.1} parent=1 // pred_check_branch
      %15 = sbr.rel (0) target = $region5
    $region4: #{tpu_custom_call.1} parent=1 // pred_region
      %s17 = ssub.s32 128, 128
      %18 = vsyncadd [#allocation3], %s17
      %s20 = sshll.u32 [#allocation2], 4
      %s21 = int_to_ptr.vmem [resolvable:$true] %s20
      %23 = dma.hbm_to_vmem [thread:$0]  %s0, 128, %s21, [#allocation3]
    $region5: #{tpu_custom_call.1} parent=1 // pred_fallthru
      _
    // Predicated region
    $region6: #{tpu_custom_call.1} parent=1 // pred_check
      _
    $region7: #{tpu_custom_call.1} parent=1 // pred_check_branch
      %25 = sbr.rel (0) target = $region9
    $region8: #{tpu_custom_call.1} parent=1 // pred_region
      %s27 = ssub.s32 512, 512
      %28 = vsyncadd [#allocation6], %s27
      %s29 = sshll.u32 [#allocation5], 4
      %s30 = int_to_ptr.vmem [resolvable:$true] %s29
      %35 = dma.hbm_to_vmem [thread:$0]  %s1, 512, %s30, [#allocation6], 128, 128, 8
    $region9: #{tpu_custom_call.1} parent=1 // pred_fallthru
      _
    // Predicated region
    $region10: #{tpu_custom_call.1} parent=1 // pred_check
      _
    $region11: #{tpu_custom_call.1} parent=1 // pred_check_branch
      %37 = sbr.rel (0) target = $region13
    $region12: #{tpu_custom_call.1} parent=1 // pred_region
      _
    $region13: #{tpu_custom_call.1} parent=1 // pred_fallthru
      _
    // Predicated region
    $region14: #{tpu_custom_call.1} parent=1 // pred_check
      _
    $region15: #{tpu_custom_call.1} parent=1 // pred_check_branch
      %39 = sbr.rel (0) target = $region17
    $region16: #{tpu_custom_call.1} parent=1 // pred_region
      %s41 = ssub.s32 24576, 24576
      %42 = vsyncadd [#allocation6], %s41
      %s43 = sshll.u32 [#allocation7], 4
      %s44 = int_to_ptr.vmem [resolvable:$true] %s43
      %49 = dma.hbm_to_vmem [thread:$0]  %s3, 24576, %s44, [#allocation6], 1536, 1536, 96
    $region17: #{tpu_custom_call.1} parent=1 // pred_fallthru
      _
    // Predicated region
    $region18: #{tpu_custom_call.1} parent=1 // pred_check
      _
    $region19: #{tpu_custom_call.1} parent=1 // pred_check_branch
      %51 = sbr.rel (0) target = $region21
    $region20: #{tpu_custom_call.1} parent=1 // pred_region
      %s53 = ssub.s32 384, 384
      %54 = vsyncadd [#allocation9], %s53
      %s56 = sshll.u32 [#allocation8], 4
      %s57 = int_to_ptr.vmem [resolvable:$true] %s56
      %59 = dma.hbm_to_vmem [thread:$0]  %s4, 384, %s57, [#allocation9]
    $region21: #{tpu_custom_call.1} parent=1 // pred_fallthru
      _
    // Predicated region
    $region22: #{tpu_custom_call.1} parent=1 // pred_check
      _
    $region23: #{tpu_custom_call.1} parent=1 // pred_check_branch
      %61 = sbr.rel (0) target = $region25
    $region24: #{tpu_custom_call.1} parent=1 // pred_region
      %62 = dma.done [#allocation3], 128
    $region25: #{tpu_custom_call.1} parent=1 // pred_fallthru
      _
    // Predicated region
    $region26: #{tpu_custom_call.1} parent=1 // pred_check
      _
    $region27: #{tpu_custom_call.1} parent=1 // pred_check_branch
      %64 = sbr.rel (0) target = $region29
    $region28: #{tpu_custom_call.1} parent=1 // pred_region
      %65 = dma.done [#allocation6], 512
    $region29: #{tpu_custom_call.1} parent=1 // pred_fallthru
      _
    // Predicated region
    $region30: #{tpu_custom_call.1} parent=1 // pred_check
      _
    $region31: #{tpu_custom_call.1} parent=1 // pred_check_branch
      %67 = sbr.rel (0) target = $region33
    $region32: #{tpu_custom_call.1} parent=1 // pred_region
      %68 = dma.done [#allocation6], 24576
    $region33: #{tpu_custom_call.1} parent=1 // pred_fallthru
      _
    // Predicated region
    $region34: #{tpu_custom_call.1} parent=1 // pred_check
      _
    $region35: #{tpu_custom_call.1} parent=1 // pred_check_branch
      %70 = sbr.rel (0) target = $region37
    $region36: #{tpu_custom_call.1} parent=1 // pred_region
      %71 = dma.done [#allocation9], 384
    $region37: #{tpu_custom_call.1} parent=1 // pred_fallthru
      _
    %v73 = vld [vmem:[#allocation2] sm:$0xff]
    %v74 = vld [vmem:[#allocation5] sm:$0xff]
    %v75 = vld [vmem:[#allocation5 + $0x8] sm:$0xff]
    %v76 = vld [vmem:[#allocation5 + $0x10] sm:$0xff]
    %v77 = vld [vmem:[#allocation5 + $0x18] sm:$0xff]
    %v78 = vld [vmem:[%s2] sm:$0x1]
    %v80 = vlaneseq
    %v81 = vshrl.u32 %v80, 7
    %v82 = vsub.s32 0, %v81
    %v83 = vrot.slane %v78, %v82
    %vm85 = vcmask 261120
    %v87 = vsel %vm85, %v73, 0
    %89 = vmatprep.subr.mxu0 0.0
    %90 = vmatpush1.msra.mxu0 0.0
    %91 = vmatprep.subr.mxu0 0.0
    %92 = vmatpush1.msra.mxu0 0.0
    %93 = vmatprep.subr.mxu0 0.0
    %94 = vmatpush1.msra.mxu0 0.0
    %95 = vmatprep.subr.mxu0 0.0
    %96 = vmatpush1.msra.mxu0 0.0
    %97 = vmatprep.subr.mxu0 0.0
    %98 = vmatpush1.msra.mxu0 0.0
    %99 = vmatprep.subr.mxu0 0.0
    %100 = vmatpush1.msra.mxu0 0.0
    %101 = vmatprep.subr.mxu0 0.0
    %102 = vmatpush1.msra.mxu0 0.0
    %103 = vmatprep.subr.mxu0 0.0
    %104 = vmatpush1.msra.mxu0 0.0
    %105 = vmatprep.subr.mxu0 0.0
    %106 = vmatpush1.msra.mxu0 0.0
    %107 = vmatprep.subr.mxu0 0.0
    %108 = vmatpush1.msra.mxu0 0.0
    %109 = vmatprep.subr.mxu0 0.0
    %110 = vmatpush1.msra.mxu0 0.0
    %111 = vmatprep.subr.mxu0 0.0
    %112 = vmatpush1.msra.mxu0 0.0
    %113 = vmatprep.subr.mxu0 0.0
    %114 = vmatpush1.msra.mxu0 %v77
    %115 = vmatprep.subr.mxu0 0.0
    %116 = vmatpush1.msra.mxu0 %v76
    %117 = vmatprep.subr.mxu0 0.0
    %118 = vmatpush1.msra.mxu0 %v75
    %119 = vmatprep.subr.mxu0 0.0
    %120 = vmatpush1.msra.mxu0 %v74
    %121 = vmatprep.subr.mxu0 0.0
    %122 = vmatpush2.msra.mxu0 0.0
    %123 = vmatprep.subr.mxu0 0.0
    %124 = vmatpush2.msra.mxu0 0.0
    %125 = vmatprep.subr.mxu0 0.0
    %126 = vmatpush2.msra.mxu0 0.0
    %127 = vmatprep.subr.mxu0 0.0
    %128 = vmatpush2.msra.mxu0 0.0
    %129 = vmatprep.subr.mxu0 0.0
    %130 = vmatpush2.msra.mxu0 0.0
    %131 = vmatprep.subr.mxu0 0.0
    %132 = vmatpush2.msra.mxu0 0.0
    %133 = vmatprep.subr.mxu0 0.0
    %134 = vmatpush2.msra.mxu0 0.0
    %135 = vmatprep.subr.mxu0 0.0
    %136 = vmatpush2.msra.mxu0 0.0
    %137 = vmatprep.subr.mxu0 0.0
    %138 = vmatpush2.msra.mxu0 0.0
    %139 = vmatprep.subr.mxu0 0.0
    %140 = vmatpush2.msra.mxu0 0.0
    %141 = vmatprep.subr.mxu0 0.0
    %142 = vmatpush2.msra.mxu0 0.0
    %143 = vmatprep.subr.mxu0 0.0
    %144 = vmatpush2.msra.mxu0 0.0
    %145 = vmatprep.subr.mxu0 0.0
    %146 = vmatpush2.msra.mxu0 0.0
    %147 = vmatprep.subr.mxu0 0.0
    %148 = vmatpush2.msra.mxu0 0.0
    %149 = vmatprep.subr.mxu0 0.0
    %150 = vmatpush2.msra.mxu0 0.0
    %151 = vmatprep.subr.mxu0 0.0
    %152 = vmatpush2.msra.mxu0 0.0
    %153 = vmatprep.mubr.f32.mxu0 0.0
    %154 = vmatmul.mubr.f32.gmra.mxu0 %v87
    %v155 = vpop.f32.mrf.mxu0
    %v156 = vadd.f32 %v83, %v155
    %v157 = vpop.f32.mrf.mxu0
    %158 = vdwg.mxu0
    %v159 = vmax.f32 %v156, 0.0
    %v160 = vpack.c.bf16 %v159, %v159
    %v161 = vld [vmem:[#allocation7] sm:$0xff]
    %v162 = vld [vmem:[#allocation7 + $0x8] sm:$0xff]
    %v163 = vld [vmem:[#allocation7 + $0x10] sm:$0xff]
    %v164 = vld [vmem:[#allocation7 + $0x18] sm:$0xff]
    %v165 = vld [vmem:[#allocation7 + $0x20] sm:$0xff]
    %v166 = vld [vmem:[#allocation7 + $0x28] sm:$0xff]
    %v167 = vld [vmem:[#allocation7 + $0x30] sm:$0xff]
    %v168 = vld [vmem:[#allocation7 + $0x38] sm:$0xff]
    %v169 = vld [vmem:[#allocation7 + $0x40] sm:$0xff]
    %v170 = vld [vmem:[#allocation7 + $0x48] sm:$0xff]
    %v171 = vld [vmem:[#allocation7 + $0x50] sm:$0xff]
    %v172 = vld [vmem:[#allocation7 + $0x58] sm:$0xff]
    %v173 = vld [vmem:[#allocation7 + $0x60] sm:$0xff]
    %v174 = vld [vmem:[#allocation7 + $0x68] sm:$0xff]
    %v175 = vld [vmem:[#allocation7 + $0x70] sm:$0xff]
    %v176 = vld [vmem:[#allocation7 + $0x78] sm:$0xff]
    %v177 = vld [vmem:[#allocation7 + $0x80] sm:$0xff]
    %v178 = vld [vmem:[#allocation7 + $0x88] sm:$0xff]
    %v179 = vld [vmem:[#allocation7 + $0x90] sm:$0xff]
    %v180 = vld [vmem:[#allocation7 + $0x98] sm:$0xff]
    %v181 = vld [vmem:[#allocation7 + $0xa0] sm:$0xff]
    %v182 = vld [vmem:[#allocation7 + $0xa8] sm:$0xff]
    %v183 = vld [vmem:[#allocation7 + $0xb0] sm:$0xff]
    %v184 = vld [vmem:[#allocation7 + $0xb8] sm:$0xff]
    %v185 = vld [vmem:[#allocation7 + $0xc0] sm:$0xff]
    %v186 = vld [vmem:[#allocation7 + $0xc8] sm:$0xff]
    %v187 = vld [vmem:[#allocation7 + $0xd0] sm:$0xff]
    %v188 = vld [vmem:[#allocation7 + $0xd8] sm:$0xff]
    %v189 = vld [vmem:[#allocation7 + $0xe0] sm:$0xff]
    %v190 = vld [vmem:[#allocation7 + $0xe8] sm:$0xff]
    %v191 = vld [vmem:[#allocation7 + $0xf0] sm:$0xff]
    %v192 = vld [vmem:[#allocation7 + $0xf8] sm:$0xff]
    %v193 = vld [vmem:[#allocation7 + $0x100] sm:$0xff]
    %v194 = vld [vmem:[#allocation7 + $0x108] sm:$0xff]
    %v195 = vld [vmem:[#allocation7 + $0x110] sm:$0xff]
    %v196 = vld [vmem:[#allocation7 + $0x118] sm:$0xff]
    %v197 = vld [vmem:[#allocation7 + $0x120] sm:$0xff]
    %v198 = vld [vmem:[#allocation7 + $0x128] sm:$0xff]
    %v199 = vld [vmem:[#allocation7 + $0x130] sm:$0xff]
    %v200 = vld [vmem:[#allocation7 + $0x138] sm:$0xff]
    %v201 = vld [vmem:[#allocation7 + $0x140] sm:$0xff]
    %v202 = vld [vmem:[#allocation7 + $0x148] sm:$0xff]
    %v203 = vld [vmem:[#allocation7 + $0x150] sm:$0xff]
    %v204 = vld [vmem:[#allocation7 + $0x158] sm:$0xff]
    %v205 = vld [vmem:[#allocation7 + $0x160] sm:$0xff]
    %v206 = vld [vmem:[#allocation7 + $0x168] sm:$0xff]
    %v207 = vld [vmem:[#allocation7 + $0x170] sm:$0xff]
    %v208 = vld [vmem:[#allocation7 + $0x178] sm:$0xff]
    %v209 = vld [vmem:[#allocation7 + $0x180] sm:$0xff]
    %v210 = vld [vmem:[#allocation7 + $0x188] sm:$0xff]
    %v211 = vld [vmem:[#allocation7 + $0x190] sm:$0xff]
    %v212 = vld [vmem:[#allocation7 + $0x198] sm:$0xff]
    %v213 = vld [vmem:[#allocation7 + $0x1a0] sm:$0xff]
    %v214 = vld [vmem:[#allocation7 + $0x1a8] sm:$0xff]
    %v215 = vld [vmem:[#allocation7 + $0x1b0] sm:$0xff]
    %v216 = vld [vmem:[#allocation7 + $0x1b8] sm:$0xff]
    %v217 = vld [vmem:[#allocation7 + $0x1c0] sm:$0xff]
    %v218 = vld [vmem:[#allocation7 + $0x1c8] sm:$0xff]
    %v219 = vld [vmem:[#allocation7 + $0x1d0] sm:$0xff]
    %v220 = vld [vmem:[#allocation7 + $0x1d8] sm:$0xff]
    %v221 = vld [vmem:[#allocation7 + $0x1e0] sm:$0xff]
    %v222 = vld [vmem:[#allocation7 + $0x1e8] sm:$0xff]
    %v223 = vld [vmem:[#allocation7 + $0x1f0] sm:$0xff]
    %v224 = vld [vmem:[#allocation7 + $0x1f8] sm:$0xff]
    %v225 = vld [vmem:[#allocation7 + $0x200] sm:$0xff]
    %v226 = vld [vmem:[#allocation7 + $0x208] sm:$0xff]
    %v227 = vld [vmem:[#allocation7 + $0x210] sm:$0xff]
    %v228 = vld [vmem:[#allocation7 + $0x218] sm:$0xff]
    %v229 = vld [vmem:[#allocation7 + $0x220] sm:$0xff]
    %v230 = vld [vmem:[#allocation7 + $0x228] sm:$0xff]
    %v231 = vld [vmem:[#allocation7 + $0x230] sm:$0xff]
    %v232 = vld [vmem:[#allocation7 + $0x238] sm:$0xff]
    %v233 = vld [vmem:[#allocation7 + $0x240] sm:$0xff]
    %v234 = vld [vmem:[#allocation7 + $0x248] sm:$0xff]
    %v235 = vld [vmem:[#allocation7 + $0x250] sm:$0xff]
    %v236 = vld [vmem:[#allocation7 + $0x258] sm:$0xff]
    %v237 = vld [vmem:[#allocation7 + $0x260] sm:$0xff]
    %v238 = vld [vmem:[#allocation7 + $0x268] sm:$0xff]
    %v239 = vld [vmem:[#allocation7 + $0x270] sm:$0xff]
    %v240 = vld [vmem:[#allocation7 + $0x278] sm:$0xff]
    %v241 = vld [vmem:[#allocation7 + $0x280] sm:$0xff]
    %v242 = vld [vmem:[#allocation7 + $0x288] sm:$0xff]
    %v243 = vld [vmem:[#allocation7 + $0x290] sm:$0xff]
    %v244 = vld [vmem:[#allocation7 + $0x298] sm:$0xff]
    %v245 = vld [vmem:[#allocation7 + $0x2a0] sm:$0xff]
    %v246 = vld [vmem:[#allocation7 + $0x2a8] sm:$0xff]
    %v247 = vld [vmem:[#allocation7 + $0x2b0] sm:$0xff]
    %v248 = vld [vmem:[#allocation7 + $0x2b8] sm:$0xff]
    %v249 = vld [vmem:[#allocation7 + $0x2c0] sm:$0xff]
    %v250 = vld [vmem:[#allocation7 + $0x2c8] sm:$0xff]
    %v251 = vld [vmem:[#allocation7 + $0x2d0] sm:$0xff]
    %v252 = vld [vmem:[#allocation7 + $0x2d8] sm:$0xff]
    %v253 = vld [vmem:[#allocation7 + $0x2e0] sm:$0xff]
    %v254 = vld [vmem:[#allocation7 + $0x2e8] sm:$0xff]
    %v255 = vld [vmem:[#allocation7 + $0x2f0] sm:$0xff]
    %v256 = vld [vmem:[#allocation7 + $0x2f8] sm:$0xff]
    %v257 = vld [vmem:[#allocation7 + $0x300] sm:$0xff]
    %v258 = vld [vmem:[#allocation7 + $0x308] sm:$0xff]
    %v259 = vld [vmem:[#allocation7 + $0x310] sm:$0xff]
    %v260 = vld [vmem:[#allocation7 + $0x318] sm:$0xff]
    %v261 = vld [vmem:[#allocation7 + $0x320] sm:$0xff]
    %v262 = vld [vmem:[#allocation7 + $0x328] sm:$0xff]
    %v263 = vld [vmem:[#allocation7 + $0x330] sm:$0xff]
    %v264 = vld [vmem:[#allocation7 + $0x338] sm:$0xff]
    %v265 = vld [vmem:[#allocation7 + $0x340] sm:$0xff]
    %v266 = vld [vmem:[#allocation7 + $0x348] sm:$0xff]
    %v267 = vld [vmem:[#allocation7 + $0x350] sm:$0xff]
    %v268 = vld [vmem:[#allocation7 + $0x358] sm:$0xff]
    %v269 = vld [vmem:[#allocation7 + $0x360] sm:$0xff]
    %v270 = vld [vmem:[#allocation7 + $0x368] sm:$0xff]
    %v271 = vld [vmem:[#allocation7 + $0x370] sm:$0xff]
    %v272 = vld [vmem:[#allocation7 + $0x378] sm:$0xff]
    %v273 = vld [vmem:[#allocation7 + $0x380] sm:$0xff]
    %v274 = vld [vmem:[#allocation7 + $0x388] sm:$0xff]
    %v275 = vld [vmem:[#allocation7 + $0x390] sm:$0xff]
    %v276 = vld [vmem:[#allocation7 + $0x398] sm:$0xff]
    %v277 = vld [vmem:[#allocation7 + $0x3a0] sm:$0xff]
    %v278 = vld [vmem:[#allocation7 + $0x3a8] sm:$0xff]
    %v279 = vld [vmem:[#allocation7 + $0x3b0] sm:$0xff]
    %v280 = vld [vmem:[#allocation7 + $0x3b8] sm:$0xff]
    %v281 = vld [vmem:[#allocation7 + $0x3c0] sm:$0xff]
    %v282 = vld [vmem:[#allocation7 + $0x3c8] sm:$0xff]
    %v283 = vld [vmem:[#allocation7 + $0x3d0] sm:$0xff]
    %v284 = vld [vmem:[#allocation7 + $0x3d8] sm:$0xff]
    %v285 = vld [vmem:[#allocation7 + $0x3e0] sm:$0xff]
    %v286 = vld [vmem:[#allocation7 + $0x3e8] sm:$0xff]
    %v287 = vld [vmem:[#allocation7 + $0x3f0] sm:$0xff]
    %v288 = vld [vmem:[#allocation7 + $0x3f8] sm:$0xff]
    %v289 = vld [vmem:[#allocation7 + $0x400] sm:$0xff]
    %v290 = vld [vmem:[#allocation7 + $0x408] sm:$0xff]
    %v291 = vld [vmem:[#allocation7 + $0x410] sm:$0xff]
    %v292 = vld [vmem:[#allocation7 + $0x418] sm:$0xff]
    %v293 = vld [vmem:[#allocation7 + $0x420] sm:$0xff]
    %v294 = vld [vmem:[#allocation7 + $0x428] sm:$0xff]
    %v295 = vld [vmem:[#allocation7 + $0x430] sm:$0xff]
    %v296 = vld [vmem:[#allocation7 + $0x438] sm:$0xff]
    %v297 = vld [vmem:[#allocation7 + $0x440] sm:$0xff]
    %v298 = vld [vmem:[#allocation7 + $0x448] sm:$0xff]
    %v299 = vld [vmem:[#allocation7 + $0x450] sm:$0xff]
    %v300 = vld [vmem:[#allocation7 + $0x458] sm:$0xff]
    %v301 = vld [vmem:[#allocation7 + $0x460] sm:$0xff]
    %v302 = vld [vmem:[#allocation7 + $0x468] sm:$0xff]
    %v303 = vld [vmem:[#allocation7 + $0x470] sm:$0xff]
    %v304 = vld [vmem:[#allocation7 + $0x478] sm:$0xff]
    %v305 = vld [vmem:[#allocation7 + $0x480] sm:$0xff]
    %v306 = vld [vmem:[#allocation7 + $0x488] sm:$0xff]
    %v307 = vld [vmem:[#allocation7 + $0x490] sm:$0xff]
    %v308 = vld [vmem:[#allocation7 + $0x498] sm:$0xff]
    %v309 = vld [vmem:[#allocation7 + $0x4a0] sm:$0xff]
    %v310 = vld [vmem:[#allocation7 + $0x4a8] sm:$0xff]
    %v311 = vld [vmem:[#allocation7 + $0x4b0] sm:$0xff]
    %v312 = vld [vmem:[#allocation7 + $0x4b8] sm:$0xff]
    %v313 = vld [vmem:[#allocation7 + $0x4c0] sm:$0xff]
    %v314 = vld [vmem:[#allocation7 + $0x4c8] sm:$0xff]
    %v315 = vld [vmem:[#allocation7 + $0x4d0] sm:$0xff]
    %v316 = vld [vmem:[#allocation7 + $0x4d8] sm:$0xff]
    %v317 = vld [vmem:[#allocation7 + $0x4e0] sm:$0xff]
    %v318 = vld [vmem:[#allocation7 + $0x4e8] sm:$0xff]
    %v319 = vld [vmem:[#allocation7 + $0x4f0] sm:$0xff]
    %v320 = vld [vmem:[#allocation7 + $0x4f8] sm:$0xff]
    %v321 = vld [vmem:[#allocation7 + $0x500] sm:$0xff]
    %v322 = vld [vmem:[#allocation7 + $0x508] sm:$0xff]
    %v323 = vld [vmem:[#allocation7 + $0x510] sm:$0xff]
    %v324 = vld [vmem:[#allocation7 + $0x518] sm:$0xff]
    %v325 = vld [vmem:[#allocation7 + $0x520] sm:$0xff]
    %v326 = vld [vmem:[#allocation7 + $0x528] sm:$0xff]
    %v327 = vld [vmem:[#allocation7 + $0x530] sm:$0xff]
    %v328 = vld [vmem:[#allocation7 + $0x538] sm:$0xff]
    %v329 = vld [vmem:[#allocation7 + $0x540] sm:$0xff]
    %v330 = vld [vmem:[#allocation7 + $0x548] sm:$0xff]
    %v331 = vld [vmem:[#allocation7 + $0x550] sm:$0xff]
    %v332 = vld [vmem:[#allocation7 + $0x558] sm:$0xff]
    %v333 = vld [vmem:[#allocation7 + $0x560] sm:$0xff]
    %v334 = vld [vmem:[#allocation7 + $0x568] sm:$0xff]
    %v335 = vld [vmem:[#allocation7 + $0x570] sm:$0xff]
    %v336 = vld [vmem:[#allocation7 + $0x578] sm:$0xff]
    %v337 = vld [vmem:[#allocation7 + $0x580] sm:$0xff]
    %v338 = vld [vmem:[#allocation7 + $0x588] sm:$0xff]
    %v339 = vld [vmem:[#allocation7 + $0x590] sm:$0xff]
    %v340 = vld [vmem:[#allocation7 + $0x598] sm:$0xff]
    %v341 = vld [vmem:[#allocation7 + $0x5a0] sm:$0xff]
    %v342 = vld [vmem:[#allocation7 + $0x5a8] sm:$0xff]
    %v343 = vld [vmem:[#allocation7 + $0x5b0] sm:$0xff]
    %v344 = vld [vmem:[#allocation7 + $0x5b8] sm:$0xff]
    %v345 = vld [vmem:[#allocation7 + $0x5c0] sm:$0xff]
    %v346 = vld [vmem:[#allocation7 + $0x5c8] sm:$0xff]
    %v347 = vld [vmem:[#allocation7 + $0x5d0] sm:$0xff]
    %v348 = vld [vmem:[#allocation7 + $0x5d8] sm:$0xff]
    %v349 = vld [vmem:[#allocation7 + $0x5e0] sm:$0xff]
    %v350 = vld [vmem:[#allocation7 + $0x5e8] sm:$0xff]
    %v351 = vld [vmem:[#allocation7 + $0x5f0] sm:$0xff]
    %v352 = vld [vmem:[#allocation7 + $0x5f8] sm:$0xff]
    %v353 = vld [vmem:[#allocation8] sm:$0xff]
    %v354 = vld [vmem:[#allocation8 + $0x8] sm:$0xff]
    %v355 = vld [vmem:[#allocation8 + $0x10] sm:$0xff]
    %v359 = vlaneseq
    %v360 = vshrl.u32 %v359, 7
    %v361 = vsub.s32 0, %v360
    %v362 = vrot.slane %v353, %v361
    %v363 = vlaneseq
    %v364 = vshrl.u32 %v363, 7
    %v365 = vsub.s32 1, %v364
    %v366 = vrot.slane %v353, %v365
    %v367 = vlaneseq
    %v368 = vshrl.u32 %v367, 7
    %v369 = vsub.s32 2, %v368
    %v370 = vrot.slane %v353, %v369
    %v371 = vlaneseq
    %v372 = vshrl.u32 %v371, 7
    %v373 = vsub.s32 3, %v372
    %v374 = vrot.slane %v353, %v373
    %v375 = vlaneseq
    %v376 = vshrl.u32 %v375, 7
    %v377 = vsub.s32 4, %v376
    %v378 = vrot.slane %v353, %v377
    %v379 = vlaneseq
    %v380 = vshrl.u32 %v379, 7
    %v381 = vsub.s32 5, %v380
    %v382 = vrot.slane %v353, %v381
    %v383 = vlaneseq
    %v384 = vshrl.u32 %v383, 7
    %v385 = vsub.s32 6, %v384
    %v386 = vrot.slane %v353, %v385
    %v387 = vlaneseq
    %v388 = vshrl.u32 %v387, 7
    %v389 = vsub.s32 7, %v388
    %v390 = vrot.slane %v353, %v389
    %v391 = vlaneseq
    %v392 = vshrl.u32 %v391, 7
    %v393 = vsub.s32 0, %v392
    %v394 = vrot.slane %v354, %v393
    %v395 = vlaneseq
    %v396 = vshrl.u32 %v395, 7
    %v397 = vsub.s32 1, %v396
    %v398 = vrot.slane %v354, %v397
    %v399 = vlaneseq
    %v400 = vshrl.u32 %v399, 7
    %v401 = vsub.s32 2, %v400
    %v402 = vrot.slane %v354, %v401
    %v403 = vlaneseq
    %v404 = vshrl.u32 %v403, 7
    %v405 = vsub.s32 3, %v404
    %v406 = vrot.slane %v354, %v405
    %v407 = vlaneseq
    %v408 = vshrl.u32 %v407, 7
    %v409 = vsub.s32 4, %v408
    %v410 = vrot.slane %v354, %v409
    %v411 = vlaneseq
    %v412 = vshrl.u32 %v411, 7
    %v413 = vsub.s32 5, %v412
    %v414 = vrot.slane %v354, %v413
    %v415 = vlaneseq
    %v416 = vshrl.u32 %v415, 7
    %v417 = vsub.s32 6, %v416
    %v418 = vrot.slane %v354, %v417
    %v419 = vlaneseq
    %v420 = vshrl.u32 %v419, 7
    %v421 = vsub.s32 7, %v420
    %v422 = vrot.slane %v354, %v421
    %v423 = vlaneseq
    %v424 = vshrl.u32 %v423, 7
    %v425 = vsub.s32 0, %v424
    %v426 = vrot.slane %v355, %v425
    %v427 = vlaneseq
    %v428 = vshrl.u32 %v427, 7
    %v429 = vsub.s32 1, %v428
    %v430 = vrot.slane %v355, %v429
    %v431 = vlaneseq
    %v432 = vshrl.u32 %v431, 7
    %v433 = vsub.s32 2, %v432
    %v434 = vrot.slane %v355, %v433
    %v435 = vlaneseq
    %v436 = vshrl.u32 %v435, 7
    %v437 = vsub.s32 3, %v436
    %v438 = vrot.slane %v355, %v437
    %v439 = vlaneseq
    %v440 = vshrl.u32 %v439, 7
    %v441 = vsub.s32 4, %v440
    %v442 = vrot.slane %v355, %v441
    %v443 = vlaneseq
    %v444 = vshrl.u32 %v443, 7
    %v445 = vsub.s32 5, %v444
    %v446 = vrot.slane %v355, %v445
    %v447 = vlaneseq
    %v448 = vshrl.u32 %v447, 7
    %v449 = vsub.s32 6, %v448
    %v450 = vrot.slane %v355, %v449
    %v451 = vlaneseq
    %v452 = vshrl.u32 %v451, 7
    %v453 = vsub.s32 7, %v452
    %v454 = vrot.slane %v355, %v453
    %v671 = vunpack.c.l.b16 %v161
    %v672 = vunpack.c.h.b16 %v161
    %v673 = vunpack.c.l.b16 %v162
    %v674 = vunpack.c.h.b16 %v162
    %v675 = vunpack.c.l.b16 %v163
    %v676 = vunpack.c.h.b16 %v163
    %v677 = vunpack.c.l.b16 %v164
    %v678 = vunpack.c.h.b16 %v164
    %v679 = vunpack.c.l.b16 %v165
    %v680 = vunpack.c.h.b16 %v165
    %v681 = vunpack.c.l.b16 %v166
    %v682 = vunpack.c.h.b16 %v166
    %v683 = vunpack.c.l.b16 %v167
    %v684 = vunpack.c.h.b16 %v167
    %v685 = vunpack.c.l.b16 %v168
    %v686 = vunpack.c.h.b16 %v168
    %v687 = vunpack.c.l.b16 %v169
    %v688 = vunpack.c.h.b16 %v169
    %v689 = vunpack.c.l.b16 %v170
    %v690 = vunpack.c.h.b16 %v170
    %v691 = vunpack.c.l.b16 %v171
    %v692 = vunpack.c.h.b16 %v171
    %v693 = vunpack.c.l.b16 %v172
    %v694 = vunpack.c.h.b16 %v172
    %v695 = vunpack.c.l.b16 %v173
    %v696 = vunpack.c.h.b16 %v173
    %v697 = vunpack.c.l.b16 %v174
    %v698 = vunpack.c.h.b16 %v174
    %v699 = vunpack.c.l.b16 %v175
    %v700 = vunpack.c.h.b16 %v175
    %v701 = vunpack.c.l.b16 %v176
    %v702 = vunpack.c.h.b16 %v176
    %v703 = vunpack.c.l.b16 %v177
    %v704 = vunpack.c.h.b16 %v177
    %v705 = vunpack.c.l.b16 %v178
    %v706 = vunpack.c.h.b16 %v178
    %v707 = vunpack.c.l.b16 %v179
    %v708 = vunpack.c.h.b16 %v179
    %v709 = vunpack.c.l.b16 %v180
    %v710 = vunpack.c.h.b16 %v180
    %v711 = vunpack.c.l.b16 %v181
    %v712 = vunpack.c.h.b16 %v181
    %v713 = vunpack.c.l.b16 %v182
    %v714 = vunpack.c.h.b16 %v182
    %v715 = vunpack.c.l.b16 %v183
    %v716 = vunpack.c.h.b16 %v183
    %v717 = vunpack.c.l.b16 %v184
    %v718 = vunpack.c.h.b16 %v184
    %v719 = vunpack.c.l.b16 %v185
    %v720 = vunpack.c.h.b16 %v185
    %v721 = vunpack.c.l.b16 %v186
    %v722 = vunpack.c.h.b16 %v186
    %v723 = vunpack.c.l.b16 %v187
    %v724 = vunpack.c.h.b16 %v187
    %v725 = vunpack.c.l.b16 %v188
    %v726 = vunpack.c.h.b16 %v188
    %v727 = vunpack.c.l.b16 %v189
    %v728 = vunpack.c.h.b16 %v189
    %v729 = vunpack.c.l.b16 %v190
    %v730 = vunpack.c.h.b16 %v190
    %v731 = vunpack.c.l.b16 %v191
    %v732 = vunpack.c.h.b16 %v191
    %v733 = vunpack.c.l.b16 %v192
    %v734 = vunpack.c.h.b16 %v192
    %v735 = vunpack.c.l.b16 %v193
    %v736 = vunpack.c.h.b16 %v193
    %v737 = vunpack.c.l.b16 %v194
    %v738 = vunpack.c.h.b16 %v194
    %v739 = vunpack.c.l.b16 %v195
    %v740 = vunpack.c.h.b16 %v195
    %v741 = vunpack.c.l.b16 %v196
    %v742 = vunpack.c.h.b16 %v196
    %v743 = vunpack.c.l.b16 %v197
    %v744 = vunpack.c.h.b16 %v197
    %v745 = vunpack.c.l.b16 %v198
    %v746 = vunpack.c.h.b16 %v198
    %v747 = vunpack.c.l.b16 %v199
    %v748 = vunpack.c.h.b16 %v199
    %v749 = vunpack.c.l.b16 %v200
    %v750 = vunpack.c.h.b16 %v200
    %v751 = vunpack.c.l.b16 %v201
    %v752 = vunpack.c.h.b16 %v201
    %v753 = vunpack.c.l.b16 %v202
    %v754 = vunpack.c.h.b16 %v202
    %v755 = vunpack.c.l.b16 %v203
    %v756 = vunpack.c.h.b16 %v203
    %v757 = vunpack.c.l.b16 %v204
    %v758 = vunpack.c.h.b16 %v204
    %v759 = vunpack.c.l.b16 %v205
    %v760 = vunpack.c.h.b16 %v205
    %v761 = vunpack.c.l.b16 %v206
    %v762 = vunpack.c.h.b16 %v206
    %v763 = vunpack.c.l.b16 %v207
    %v764 = vunpack.c.h.b16 %v207
    %v765 = vunpack.c.l.b16 %v208
    %v766 = vunpack.c.h.b16 %v208
    %v767 = vunpack.c.l.b16 %v209
    %v768 = vunpack.c.h.b16 %v209
    %v769 = vunpack.c.l.b16 %v210
    %v770 = vunpack.c.h.b16 %v210
    %v771 = vunpack.c.l.b16 %v211
    %v772 = vunpack.c.h.b16 %v211
    %v773 = vunpack.c.l.b16 %v212
    %v774 = vunpack.c.h.b16 %v212
    %v775 = vunpack.c.l.b16 %v213
    %v776 = vunpack.c.h.b16 %v213
    %v777 = vunpack.c.l.b16 %v214
    %v778 = vunpack.c.h.b16 %v214
    %v779 = vunpack.c.l.b16 %v215
    %v780 = vunpack.c.h.b16 %v215
    %v781 = vunpack.c.l.b16 %v216
    %v782 = vunpack.c.h.b16 %v216
    %v783 = vunpack.c.l.b16 %v217
    %v784 = vunpack.c.h.b16 %v217
    %v785 = vunpack.c.l.b16 %v218
    %v786 = vunpack.c.h.b16 %v218
    %v787 = vunpack.c.l.b16 %v219
    %v788 = vunpack.c.h.b16 %v219
    %v789 = vunpack.c.l.b16 %v220
    %v790 = vunpack.c.h.b16 %v220
    %v791 = vunpack.c.l.b16 %v221
    %v792 = vunpack.c.h.b16 %v221
    %v793 = vunpack.c.l.b16 %v222
    %v794 = vunpack.c.h.b16 %v222
    %v795 = vunpack.c.l.b16 %v223
    %v796 = vunpack.c.h.b16 %v223
    %v797 = vunpack.c.l.b16 %v224
    %v798 = vunpack.c.h.b16 %v224
    %v799 = vunpack.c.l.b16 %v225
    %v800 = vunpack.c.h.b16 %v225
    %v801 = vunpack.c.l.b16 %v226
    %v802 = vunpack.c.h.b16 %v226
    %v803 = vunpack.c.l.b16 %v227
    %v804 = vunpack.c.h.b16 %v227
    %v805 = vunpack.c.l.b16 %v228
    %v806 = vunpack.c.h.b16 %v228
    %v807 = vunpack.c.l.b16 %v229
    %v808 = vunpack.c.h.b16 %v229
    %v809 = vunpack.c.l.b16 %v230
    %v810 = vunpack.c.h.b16 %v230
    %v811 = vunpack.c.l.b16 %v231
    %v812 = vunpack.c.h.b16 %v231
    %v813 = vunpack.c.l.b16 %v232
    %v814 = vunpack.c.h.b16 %v232
    %v815 = vunpack.c.l.b16 %v233
    %v816 = vunpack.c.h.b16 %v233
    %v817 = vunpack.c.l.b16 %v234
    %v818 = vunpack.c.h.b16 %v234
    %v819 = vunpack.c.l.b16 %v235
    %v820 = vunpack.c.h.b16 %v235
    %v821 = vunpack.c.l.b16 %v236
    %v822 = vunpack.c.h.b16 %v236
    %v823 = vunpack.c.l.b16 %v237
    %v824 = vunpack.c.h.b16 %v237
    %v825 = vunpack.c.l.b16 %v238
    %v826 = vunpack.c.h.b16 %v238
    %v827 = vunpack.c.l.b16 %v239
    %v828 = vunpack.c.h.b16 %v239
    %v829 = vunpack.c.l.b16 %v240
    %v830 = vunpack.c.h.b16 %v240
    %v831 = vunpack.c.l.b16 %v241
    %v832 = vunpack.c.h.b16 %v241
    %v833 = vunpack.c.l.b16 %v242
    %v834 = vunpack.c.h.b16 %v242
    %v835 = vunpack.c.l.b16 %v243
    %v836 = vunpack.c.h.b16 %v243
    %v837 = vunpack.c.l.b16 %v244
    %v838 = vunpack.c.h.b16 %v244
    %v839 = vunpack.c.l.b16 %v245
    %v840 = vunpack.c.h.b16 %v245
    %v841 = vunpack.c.l.b16 %v246
    %v842 = vunpack.c.h.b16 %v246
    %v843 = vunpack.c.l.b16 %v247
    %v844 = vunpack.c.h.b16 %v247
    %v845 = vunpack.c.l.b16 %v248
    %v846 = vunpack.c.h.b16 %v248
    %v847 = vunpack.c.l.b16 %v249
    %v848 = vunpack.c.h.b16 %v249
    %v849 = vunpack.c.l.b16 %v250
    %v850 = vunpack.c.h.b16 %v250
    %v851 = vunpack.c.l.b16 %v251
    %v852 = vunpack.c.h.b16 %v251
    %v853 = vunpack.c.l.b16 %v252
    %v854 = vunpack.c.h.b16 %v252
    %v855 = vunpack.c.l.b16 %v253
    %v856 = vunpack.c.h.b16 %v253
    %v857 = vunpack.c.l.b16 %v254
    %v858 = vunpack.c.h.b16 %v254
    %v859 = vunpack.c.l.b16 %v255
    %v860 = vunpack.c.h.b16 %v255
    %v861 = vunpack.c.l.b16 %v256
    %v862 = vunpack.c.h.b16 %v256
    %v863 = vunpack.c.l.b16 %v257
    %v864 = vunpack.c.h.b16 %v257
    %v865 = vunpack.c.l.b16 %v258
    %v866 = vunpack.c.h.b16 %v258
    %v867 = vunpack.c.l.b16 %v259
    %v868 = vunpack.c.h.b16 %v259
    %v869 = vunpack.c.l.b16 %v260
    %v870 = vunpack.c.h.b16 %v260
    %v871 = vunpack.c.l.b16 %v261
    %v872 = vunpack.c.h.b16 %v261
    %v873 = vunpack.c.l.b16 %v262
    %v874 = vunpack.c.h.b16 %v262
    %v875 = vunpack.c.l.b16 %v263
    %v876 = vunpack.c.h.b16 %v263
    %v877 = vunpack.c.l.b16 %v264
    %v878 = vunpack.c.h.b16 %v264
    %v879 = vunpack.c.l.b16 %v265
    %v880 = vunpack.c.h.b16 %v265
    %v881 = vunpack.c.l.b16 %v266
    %v882 = vunpack.c.h.b16 %v266
    %v883 = vunpack.c.l.b16 %v267
    %v884 = vunpack.c.h.b16 %v267
    %v885 = vunpack.c.l.b16 %v268
    %v886 = vunpack.c.h.b16 %v268
    %v887 = vunpack.c.l.b16 %v269
    %v888 = vunpack.c.h.b16 %v269
    %v889 = vunpack.c.l.b16 %v270
    %v890 = vunpack.c.h.b16 %v270
    %v891 = vunpack.c.l.b16 %v271
    %v892 = vunpack.c.h.b16 %v271
    %v893 = vunpack.c.l.b16 %v272
    %v894 = vunpack.c.h.b16 %v272
    %v895 = vunpack.c.l.b16 %v273
    %v896 = vunpack.c.h.b16 %v273
    %v897 = vunpack.c.l.b16 %v274
    %v898 = vunpack.c.h.b16 %v274
    %v899 = vunpack.c.l.b16 %v275
    %v900 = vunpack.c.h.b16 %v275
    %v901 = vunpack.c.l.b16 %v276
    %v902 = vunpack.c.h.b16 %v276
    %v903 = vunpack.c.l.b16 %v277
    %v904 = vunpack.c.h.b16 %v277
    %v905 = vunpack.c.l.b16 %v278
    %v906 = vunpack.c.h.b16 %v278
    %v907 = vunpack.c.l.b16 %v279
    %v908 = vunpack.c.h.b16 %v279
    %v909 = vunpack.c.l.b16 %v280
    %v910 = vunpack.c.h.b16 %v280
    %v911 = vunpack.c.l.b16 %v281
    %v912 = vunpack.c.h.b16 %v281
    %v913 = vunpack.c.l.b16 %v282
    %v914 = vunpack.c.h.b16 %v282
    %v915 = vunpack.c.l.b16 %v283
    %v916 = vunpack.c.h.b16 %v283
    %v917 = vunpack.c.l.b16 %v284
    %v918 = vunpack.c.h.b16 %v284
    %v919 = vunpack.c.l.b16 %v285
    %v920 = vunpack.c.h.b16 %v285
    %v921 = vunpack.c.l.b16 %v286
    %v922 = vunpack.c.h.b16 %v286
    %v923 = vunpack.c.l.b16 %v287
    %v924 = vunpack.c.h.b16 %v287
    %v925 = vunpack.c.l.b16 %v288
    %v926 = vunpack.c.h.b16 %v288
    %v927 = vunpack.c.l.b16 %v289
    %v928 = vunpack.c.h.b16 %v289
    %v929 = vunpack.c.l.b16 %v290
    %v930 = vunpack.c.h.b16 %v290
    %v931 = vunpack.c.l.b16 %v291
    %v932 = vunpack.c.h.b16 %v291
    %v933 = vunpack.c.l.b16 %v292
    %v934 = vunpack.c.h.b16 %v292
    %v935 = vunpack.c.l.b16 %v293
    %v936 = vunpack.c.h.b16 %v293
    %v937 = vunpack.c.l.b16 %v294
    %v938 = vunpack.c.h.b16 %v294
    %v939 = vunpack.c.l.b16 %v295
    %v940 = vunpack.c.h.b16 %v295
    %v941 = vunpack.c.l.b16 %v296
    %v942 = vunpack.c.h.b16 %v296
    %v943 = vunpack.c.l.b16 %v297
    %v944 = vunpack.c.h.b16 %v297
    %v945 = vunpack.c.l.b16 %v298
    %v946 = vunpack.c.h.b16 %v298
    %v947 = vunpack.c.l.b16 %v299
    %v948 = vunpack.c.h.b16 %v299
    %v949 = vunpack.c.l.b16 %v300
    %v950 = vunpack.c.h.b16 %v300
    %v951 = vunpack.c.l.b16 %v301
    %v952 = vunpack.c.h.b16 %v301
    %v953 = vunpack.c.l.b16 %v302
    %v954 = vunpack.c.h.b16 %v302
    %v955 = vunpack.c.l.b16 %v303
    %v956 = vunpack.c.h.b16 %v303
    %v957 = vunpack.c.l.b16 %v304
    %v958 = vunpack.c.h.b16 %v304
    %v959 = vunpack.c.l.b16 %v305
    %v960 = vunpack.c.h.b16 %v305
    %v961 = vunpack.c.l.b16 %v306
    %v962 = vunpack.c.h.b16 %v306
    %v963 = vunpack.c.l.b16 %v307
    %v964 = vunpack.c.h.b16 %v307
    %v965 = vunpack.c.l.b16 %v308
    %v966 = vunpack.c.h.b16 %v308
    %v967 = vunpack.c.l.b16 %v309
    %v968 = vunpack.c.h.b16 %v309
    %v969 = vunpack.c.l.b16 %v310
    %v970 = vunpack.c.h.b16 %v310
    %v971 = vunpack.c.l.b16 %v311
    %v972 = vunpack.c.h.b16 %v311
    %v973 = vunpack.c.l.b16 %v312
    %v974 = vunpack.c.h.b16 %v312
    %v975 = vunpack.c.l.b16 %v313
    %v976 = vunpack.c.h.b16 %v313
    %v977 = vunpack.c.l.b16 %v314
    %v978 = vunpack.c.h.b16 %v314
    %v979 = vunpack.c.l.b16 %v315
    %v980 = vunpack.c.h.b16 %v315
    %v981 = vunpack.c.l.b16 %v316
    %v982 = vunpack.c.h.b16 %v316
    %v983 = vunpack.c.l.b16 %v317
    %v984 = vunpack.c.h.b16 %v317
    %v985 = vunpack.c.l.b16 %v318
    %v986 = vunpack.c.h.b16 %v318
    %v987 = vunpack.c.l.b16 %v319
    %v988 = vunpack.c.h.b16 %v319
    %v989 = vunpack.c.l.b16 %v320
    %v990 = vunpack.c.h.b16 %v320
    %v991 = vunpack.c.l.b16 %v321
    %v992 = vunpack.c.h.b16 %v321
    %v993 = vunpack.c.l.b16 %v322
    %v994 = vunpack.c.h.b16 %v322
    %v995 = vunpack.c.l.b16 %v323
    %v996 = vunpack.c.h.b16 %v323
    %v997 = vunpack.c.l.b16 %v324
    %v998 = vunpack.c.h.b16 %v324
    %v999 = vunpack.c.l.b16 %v325
    %v1000 = vunpack.c.h.b16 %v325
    %v1001 = vunpack.c.l.b16 %v326
    %v1002 = vunpack.c.h.b16 %v326
    %v1003 = vunpack.c.l.b16 %v327
    %v1004 = vunpack.c.h.b16 %v327
    %v1005 = vunpack.c.l.b16 %v328
    %v1006 = vunpack.c.h.b16 %v328
    %v1007 = vunpack.c.l.b16 %v329
    %v1008 = vunpack.c.h.b16 %v329
    %v1009 = vunpack.c.l.b16 %v330
    %v1010 = vunpack.c.h.b16 %v330
    %v1011 = vunpack.c.l.b16 %v331
    %v1012 = vunpack.c.h.b16 %v331
    %v1013 = vunpack.c.l.b16 %v332
    %v1014 = vunpack.c.h.b16 %v332
    %v1015 = vunpack.c.l.b16 %v333
    %v1016 = vunpack.c.h.b16 %v333
    %v1017 = vunpack.c.l.b16 %v334
    %v1018 = vunpack.c.h.b16 %v334
    %v1019 = vunpack.c.l.b16 %v335
    %v1020 = vunpack.c.h.b16 %v335
    %v1021 = vunpack.c.l.b16 %v336
    %v1022 = vunpack.c.h.b16 %v336
    %v1023 = vunpack.c.l.b16 %v337
    %v1024 = vunpack.c.h.b16 %v337
    %v1025 = vunpack.c.l.b16 %v338
    %v1026 = vunpack.c.h.b16 %v338
    %v1027 = vunpack.c.l.b16 %v339
    %v1028 = vunpack.c.h.b16 %v339
    %v1029 = vunpack.c.l.b16 %v340
    %v1030 = vunpack.c.h.b16 %v340
    %v1031 = vunpack.c.l.b16 %v341
    %v1032 = vunpack.c.h.b16 %v341
    %v1033 = vunpack.c.l.b16 %v342
    %v1034 = vunpack.c.h.b16 %v342
    %v1035 = vunpack.c.l.b16 %v343
    %v1036 = vunpack.c.h.b16 %v343
    %v1037 = vunpack.c.l.b16 %v344
    %v1038 = vunpack.c.h.b16 %v344
    %v1039 = vunpack.c.l.b16 %v345
    %v1040 = vunpack.c.h.b16 %v345
    %v1041 = vunpack.c.l.b16 %v346
    %v1042 = vunpack.c.h.b16 %v346
    %v1043 = vunpack.c.l.b16 %v347
    %v1044 = vunpack.c.h.b16 %v347
    %v1045 = vunpack.c.l.b16 %v348
    %v1046 = vunpack.c.h.b16 %v348
    %v1047 = vunpack.c.l.b16 %v349
    %v1048 = vunpack.c.h.b16 %v349
    %v1049 = vunpack.c.l.b16 %v350
    %v1050 = vunpack.c.h.b16 %v350
    %v1051 = vunpack.c.l.b16 %v351
    %v1052 = vunpack.c.h.b16 %v351
    %v1053 = vunpack.c.l.b16 %v352
    %v1054 = vunpack.c.h.b16 %v352
    %v1055 = vpack.c.b16 %v695, %v671
    %v1056 = vpack.c.b16 %v696, %v672
    %v1057 = vpack.c.b16 %v697, %v673
    %v1058 = vpack.c.b16 %v698, %v674
    %v1059 = vpack.c.b16 %v699, %v675
    %v1060 = vpack.c.b16 %v700, %v676
    %v1061 = vpack.c.b16 %v701, %v677
    %v1062 = vpack.c.b16 %v702, %v678
    %v1063 = vpack.c.b16 %v703, %v679
    %v1064 = vpack.c.b16 %v704, %v680
    %v1065 = vpack.c.b16 %v705, %v681
    %v1066 = vpack.c.b16 %v706, %v682
    %v1067 = vpack.c.b16 %v707, %v683
    %v1068 = vpack.c.b16 %v708, %v684
    %v1069 = vpack.c.b16 %v709, %v685
    %v1070 = vpack.c.b16 %v710, %v686
    %v1071 = vpack.c.b16 %v711, %v687
    %v1072 = vpack.c.b16 %v712, %v688
    %v1073 = vpack.c.b16 %v713, %v689
    %v1074 = vpack.c.b16 %v714, %v690
    %v1075 = vpack.c.b16 %v715, %v691
    %v1076 = vpack.c.b16 %v716, %v692
    %v1077 = vpack.c.b16 %v717, %v693
    %v1078 = vpack.c.b16 %v718, %v694
    %v1079 = vpack.c.b16 %v743, %v719
    %v1080 = vpack.c.b16 %v744, %v720
    %v1081 = vpack.c.b16 %v745, %v721
    %v1082 = vpack.c.b16 %v746, %v722
    %v1083 = vpack.c.b16 %v747, %v723
    %v1084 = vpack.c.b16 %v748, %v724
    %v1085 = vpack.c.b16 %v749, %v725
    %v1086 = vpack.c.b16 %v750, %v726
    %v1087 = vpack.c.b16 %v751, %v727
    %v1088 = vpack.c.b16 %v752, %v728
    %v1089 = vpack.c.b16 %v753, %v729
    %v1090 = vpack.c.b16 %v754, %v730
    %v1091 = vpack.c.b16 %v755, %v731
    %v1092 = vpack.c.b16 %v756, %v732
    %v1093 = vpack.c.b16 %v757, %v733
    %v1094 = vpack.c.b16 %v758, %v734
    %v1095 = vpack.c.b16 %v759, %v735
    %v1096 = vpack.c.b16 %v760, %v736
    %v1097 = vpack.c.b16 %v761, %v737
    %v1098 = vpack.c.b16 %v762, %v738
    %v1099 = vpack.c.b16 %v763, %v739
    %v1100 = vpack.c.b16 %v764, %v740
    %v1101 = vpack.c.b16 %v765, %v741
    %v1102 = vpack.c.b16 %v766, %v742
    %v1103 = vpack.c.b16 %v791, %v767
    %v1104 = vpack.c.b16 %v792, %v768
    %v1105 = vpack.c.b16 %v793, %v769
    %v1106 = vpack.c.b16 %v794, %v770
    %v1107 = vpack.c.b16 %v795, %v771
    %v1108 = vpack.c.b16 %v796, %v772
    %v1109 = vpack.c.b16 %v797, %v773
    %v1110 = vpack.c.b16 %v798, %v774
    %v1111 = vpack.c.b16 %v799, %v775
    %v1112 = vpack.c.b16 %v800, %v776
    %v1113 = vpack.c.b16 %v801, %v777
    %v1114 = vpack.c.b16 %v802, %v778
    %v1115 = vpack.c.b16 %v803, %v779
    %v1116 = vpack.c.b16 %v804, %v780
    %v1117 = vpack.c.b16 %v805, %v781
    %v1118 = vpack.c.b16 %v806, %v782
    %v1119 = vpack.c.b16 %v807, %v783
    %v1120 = vpack.c.b16 %v808, %v784
    %v1121 = vpack.c.b16 %v809, %v785
    %v1122 = vpack.c.b16 %v810, %v786
    %v1123 = vpack.c.b16 %v811, %v787
    %v1124 = vpack.c.b16 %v812, %v788
    %v1125 = vpack.c.b16 %v813, %v789
    %v1126 = vpack.c.b16 %v814, %v790
    %v1127 = vpack.c.b16 %v839, %v815
    %v1128 = vpack.c.b16 %v840, %v816
    %v1129 = vpack.c.b16 %v841, %v817
    %v1130 = vpack.c.b16 %v842, %v818
    %v1131 = vpack.c.b16 %v843, %v819
    %v1132 = vpack.c.b16 %v844, %v820
    %v1133 = vpack.c.b16 %v845, %v821
    %v1134 = vpack.c.b16 %v846, %v822
    %v1135 = vpack.c.b16 %v847, %v823
    %v1136 = vpack.c.b16 %v848, %v824
    %v1137 = vpack.c.b16 %v849, %v825
    %v1138 = vpack.c.b16 %v850, %v826
    %v1139 = vpack.c.b16 %v851, %v827
    %v1140 = vpack.c.b16 %v852, %v828
    %v1141 = vpack.c.b16 %v853, %v829
    %v1142 = vpack.c.b16 %v854, %v830
    %v1143 = vpack.c.b16 %v855, %v831
    %v1144 = vpack.c.b16 %v856, %v832
    %v1145 = vpack.c.b16 %v857, %v833
    %v1146 = vpack.c.b16 %v858, %v834
    %v1147 = vpack.c.b16 %v859, %v835
    %v1148 = vpack.c.b16 %v860, %v836
    %v1149 = vpack.c.b16 %v861, %v837
    %v1150 = vpack.c.b16 %v862, %v838
    %v1151 = vpack.c.b16 %v887, %v863
    %v1152 = vpack.c.b16 %v888, %v864
    %v1153 = vpack.c.b16 %v889, %v865
    %v1154 = vpack.c.b16 %v890, %v866
    %v1155 = vpack.c.b16 %v891, %v867
    %v1156 = vpack.c.b16 %v892, %v868
    %v1157 = vpack.c.b16 %v893, %v869
    %v1158 = vpack.c.b16 %v894, %v870
    %v1159 = vpack.c.b16 %v895, %v871
    %v1160 = vpack.c.b16 %v896, %v872
    %v1161 = vpack.c.b16 %v897, %v873
    %v1162 = vpack.c.b16 %v898, %v874
    %v1163 = vpack.c.b16 %v899, %v875
    %v1164 = vpack.c.b16 %v900, %v876
    %v1165 = vpack.c.b16 %v901, %v877
    %v1166 = vpack.c.b16 %v902, %v878
    %v1167 = vpack.c.b16 %v903, %v879
    %v1168 = vpack.c.b16 %v904, %v880
    %v1169 = vpack.c.b16 %v905, %v881
    %v1170 = vpack.c.b16 %v906, %v882
    %v1171 = vpack.c.b16 %v907, %v883
    %v1172 = vpack.c.b16 %v908, %v884
    %v1173 = vpack.c.b16 %v909, %v885
    %v1174 = vpack.c.b16 %v910, %v886
    %v1175 = vpack.c.b16 %v935, %v911
    %v1176 = vpack.c.b16 %v936, %v912
    %v1177 = vpack.c.b16 %v937, %v913
    %v1178 = vpack.c.b16 %v938, %v914
    %v1179 = vpack.c.b16 %v939, %v915
    %v1180 = vpack.c.b16 %v940, %v916
    %v1181 = vpack.c.b16 %v941, %v917
    %v1182 = vpack.c.b16 %v942, %v918
    %v1183 = vpack.c.b16 %v943, %v919
    %v1184 = vpack.c.b16 %v944, %v920
    %v1185 = vpack.c.b16 %v945, %v921
    %v1186 = vpack.c.b16 %v946, %v922
    %v1187 = vpack.c.b16 %v947, %v923
    %v1188 = vpack.c.b16 %v948, %v924
    %v1189 = vpack.c.b16 %v949, %v925
    %v1190 = vpack.c.b16 %v950, %v926
    %v1191 = vpack.c.b16 %v951, %v927
    %v1192 = vpack.c.b16 %v952, %v928
    %v1193 = vpack.c.b16 %v953, %v929
    %v1194 = vpack.c.b16 %v954, %v930
    %v1195 = vpack.c.b16 %v955, %v931
    %v1196 = vpack.c.b16 %v956, %v932
    %v1197 = vpack.c.b16 %v957, %v933
    %v1198 = vpack.c.b16 %v958, %v934
    %v1199 = vpack.c.b16 %v983, %v959
    %v1200 = vpack.c.b16 %v984, %v960
    %v1201 = vpack.c.b16 %v985, %v961
    %v1202 = vpack.c.b16 %v986, %v962
    %v1203 = vpack.c.b16 %v987, %v963
    %v1204 = vpack.c.b16 %v988, %v964
    %v1205 = vpack.c.b16 %v989, %v965
    %v1206 = vpack.c.b16 %v990, %v966
    %v1207 = vpack.c.b16 %v991, %v967
    %v1208 = vpack.c.b16 %v992, %v968
    %v1209 = vpack.c.b16 %v993, %v969
    %v1210 = vpack.c.b16 %v994, %v970
    %v1211 = vpack.c.b16 %v995, %v971
    %v1212 = vpack.c.b16 %v996, %v972
    %v1213 = vpack.c.b16 %v997, %v973
    %v1214 = vpack.c.b16 %v998, %v974
    %v1215 = vpack.c.b16 %v999, %v975
    %v1216 = vpack.c.b16 %v1000, %v976
    %v1217 = vpack.c.b16 %v1001, %v977
    %v1218 = vpack.c.b16 %v1002, %v978
    %v1219 = vpack.c.b16 %v1003, %v979
    %v1220 = vpack.c.b16 %v1004, %v980
    %v1221 = vpack.c.b16 %v1005, %v981
    %v1222 = vpack.c.b16 %v1006, %v982
    %v1223 = vpack.c.b16 %v1031, %v1007
    %v1224 = vpack.c.b16 %v1032, %v1008
    %v1225 = vpack.c.b16 %v1033, %v1009
    %v1226 = vpack.c.b16 %v1034, %v1010
    %v1227 = vpack.c.b16 %v1035, %v1011
    %v1228 = vpack.c.b16 %v1036, %v1012
    %v1229 = vpack.c.b16 %v1037, %v1013
    %v1230 = vpack.c.b16 %v1038, %v1014
    %v1231 = vpack.c.b16 %v1039, %v1015
    %v1232 = vpack.c.b16 %v1040, %v1016
    %v1233 = vpack.c.b16 %v1041, %v1017
    %v1234 = vpack.c.b16 %v1042, %v1018
    %v1235 = vpack.c.b16 %v1043, %v1019
    %v1236 = vpack.c.b16 %v1044, %v1020
    %v1237 = vpack.c.b16 %v1045, %v1021
    %v1238 = vpack.c.b16 %v1046, %v1022
    %v1239 = vpack.c.b16 %v1047, %v1023
    %v1240 = vpack.c.b16 %v1048, %v1024
    %v1241 = vpack.c.b16 %v1049, %v1025
    %v1242 = vpack.c.b16 %v1050, %v1026
    %v1243 = vpack.c.b16 %v1051, %v1027
    %v1244 = vpack.c.b16 %v1052, %v1028
    %v1245 = vpack.c.b16 %v1053, %v1029
    %v1246 = vpack.c.b16 %v1054, %v1030
    %1439 = vmatprep.subr.bf16.mxu0 %v1224
    %1440 = vmatpush1.bf16.msra.mxu0 %v1223
    %1441 = vmatprep.subr.bf16.mxu0 %v1200
    %1442 = vmatpush1.bf16.msra.mxu0 %v1199
    %1443 = vmatprep.subr.bf16.mxu0 %v1176
    %1444 = vmatpush1.bf16.msra.mxu0 %v1175
    %1445 = vmatprep.subr.bf16.mxu0 %v1152
    %1446 = vmatpush1.bf16.msra.mxu0 %v1151
    %1447 = vmatprep.subr.bf16.mxu0 %v1128
    %1448 = vmatpush1.bf16.msra.mxu0 %v1127
    %1449 = vmatprep.subr.bf16.mxu0 %v1104
    %1450 = vmatpush1.bf16.msra.mxu0 %v1103
    %1451 = vmatprep.subr.bf16.mxu0 %v1080
    %1452 = vmatpush1.bf16.msra.mxu0 %v1079
    %1453 = vmatprep.subr.bf16.mxu0 %v1056
    %1454 = vmatpush1.bf16.msra.mxu0 %v1055
    %1455 = vmatprep.subr.bf16.mxu0 0
    %1456 = vmatpush2.bf16.msra.mxu0 0
    %1457 = vmatprep.subr.bf16.mxu0 0
    %1458 = vmatpush2.bf16.msra.mxu0 0
    %1459 = vmatprep.subr.bf16.mxu0 0
    %1460 = vmatpush2.bf16.msra.mxu0 0
    %1461 = vmatprep.subr.bf16.mxu0 0
    %1462 = vmatpush2.bf16.msra.mxu0 0
    %1463 = vmatprep.subr.bf16.mxu0 0
    %1464 = vmatpush2.bf16.msra.mxu0 0
    %1465 = vmatprep.subr.bf16.mxu0 0
    %1466 = vmatpush2.bf16.msra.mxu0 0
    %1467 = vmatprep.subr.bf16.mxu0 0
    %1468 = vmatpush2.bf16.msra.mxu0 0
    %1469 = vmatprep.subr.bf16.mxu0 0
    %1470 = vmatpush2.bf16.msra.mxu0 0
    %1471 = vmatprep.mubr.bf16.mxu0 0
    %1472 = vmatmul.mubr.bf16.gmra.mxu0 %v160
    %v1473 = vpop.f32.mrf.mxu0
    %v1474 = vadd.f32 %v362, %v1473
    %v1475 = vpop.f32.mrf.mxu0
    %v1476 = vadd.f32 %v366, %v1475
    %v1477 = vpop.f32.mrf.mxu0
    %v1478 = vpop.f32.mrf.mxu0
    %1479 = vdwg.mxu0
    %1480 = vmatprep.subr.bf16.mxu0 %v1226
    %1481 = vmatpush1.bf16.msra.mxu0 %v1225
    %1482 = vmatprep.subr.bf16.mxu0 %v1202
    %1483 = vmatpush1.bf16.msra.mxu0 %v1201
    %1484 = vmatprep.subr.bf16.mxu0 %v1178
    %1485 = vmatpush1.bf16.msra.mxu0 %v1177
    %1486 = vmatprep.subr.bf16.mxu0 %v1154
    %1487 = vmatpush1.bf16.msra.mxu0 %v1153
    %1488 = vmatprep.subr.bf16.mxu0 %v1130
    %1489 = vmatpush1.bf16.msra.mxu0 %v1129
    %1490 = vmatprep.subr.bf16.mxu0 %v1106
    %1491 = vmatpush1.bf16.msra.mxu0 %v1105
    %1492 = vmatprep.subr.bf16.mxu0 %v1082
    %1493 = vmatpush1.bf16.msra.mxu0 %v1081
    %1494 = vmatprep.subr.bf16.mxu0 %v1058
    %1495 = vmatpush1.bf16.msra.mxu0 %v1057
    %1496 = vmatprep.subr.bf16.mxu0 0
    %1497 = vmatpush2.bf16.msra.mxu0 0
    %1498 = vmatprep.subr.bf16.mxu0 0
    %1499 = vmatpush2.bf16.msra.mxu0 0
    %1500 = vmatprep.subr.bf16.mxu0 0
    %1501 = vmatpush2.bf16.msra.mxu0 0
    %1502 = vmatprep.subr.bf16.mxu0 0
    %1503 = vmatpush2.bf16.msra.mxu0 0
    %1504 = vmatprep.subr.bf16.mxu0 0
    %1505 = vmatpush2.bf16.msra.mxu0 0
    %1506 = vmatprep.subr.bf16.mxu0 0
    %1507 = vmatpush2.bf16.msra.mxu0 0
    %1508 = vmatprep.subr.bf16.mxu0 0
    %1509 = vmatpush2.bf16.msra.mxu0 0
    %1510 = vmatprep.subr.bf16.mxu0 0
    %1511 = vmatpush2.bf16.msra.mxu0 0
    %1512 = vmatprep.mubr.bf16.mxu0 0
    %1513 = vmatmul.mubr.bf16.gmra.mxu0 %v160
    %v1514 = vpop.f32.mrf.mxu0
    %v1515 = vadd.f32 %v370, %v1514
    %v1516 = vpop.f32.mrf.mxu0
    %v1517 = vadd.f32 %v374, %v1516
    %v1518 = vpop.f32.mrf.mxu0
    %v1519 = vpop.f32.mrf.mxu0
    %1520 = vdwg.mxu0
    %1521 = vmatprep.subr.bf16.mxu0 %v1228
    %1522 = vmatpush1.bf16.msra.mxu0 %v1227
    %1523 = vmatprep.subr.bf16.mxu0 %v1204
    %1524 = vmatpush1.bf16.msra.mxu0 %v1203
    %1525 = vmatprep.subr.bf16.mxu0 %v1180
    %1526 = vmatpush1.bf16.msra.mxu0 %v1179
    %1527 = vmatprep.subr.bf16.mxu0 %v1156
    %1528 = vmatpush1.bf16.msra.mxu0 %v1155
    %1529 = vmatprep.subr.bf16.mxu0 %v1132
    %1530 = vmatpush1.bf16.msra.mxu0 %v1131
    %1531 = vmatprep.subr.bf16.mxu0 %v1108
    %1532 = vmatpush1.bf16.msra.mxu0 %v1107
    %1533 = vmatprep.subr.bf16.mxu0 %v1084
    %1534 = vmatpush1.bf16.msra.mxu0 %v1083
    %1535 = vmatprep.subr.bf16.mxu0 %v1060
    %1536 = vmatpush1.bf16.msra.mxu0 %v1059
    %1537 = vmatprep.subr.bf16.mxu0 0
    %1538 = vmatpush2.bf16.msra.mxu0 0
    %1539 = vmatprep.subr.bf16.mxu0 0
    %1540 = vmatpush2.bf16.msra.mxu0 0
    %1541 = vmatprep.subr.bf16.mxu0 0
    %1542 = vmatpush2.bf16.msra.mxu0 0
    %1543 = vmatprep.subr.bf16.mxu0 0
    %1544 = vmatpush2.bf16.msra.mxu0 0
    %1545 = vmatprep.subr.bf16.mxu0 0
    %1546 = vmatpush2.bf16.msra.mxu0 0
    %1547 = vmatprep.subr.bf16.mxu0 0
    %1548 = vmatpush2.bf16.msra.mxu0 0
    %1549 = vmatprep.subr.bf16.mxu0 0
    %1550 = vmatpush2.bf16.msra.mxu0 0
    %1551 = vmatprep.subr.bf16.mxu0 0
    %1552 = vmatpush2.bf16.msra.mxu0 0
    %1553 = vmatprep.mubr.bf16.mxu0 0
    %1554 = vmatmul.mubr.bf16.gmra.mxu0 %v160
    %v1555 = vpop.f32.mrf.mxu0
    %v1556 = vadd.f32 %v378, %v1555
    %v1557 = vpop.f32.mrf.mxu0
    %v1558 = vadd.f32 %v382, %v1557
    %v1559 = vpop.f32.mrf.mxu0
    %v1560 = vpop.f32.mrf.mxu0
    %1561 = vdwg.mxu0
    %1562 = vmatprep.subr.bf16.mxu0 %v1230
    %1563 = vmatpush1.bf16.msra.mxu0 %v1229
    %1564 = vmatprep.subr.bf16.mxu0 %v1206
    %1565 = vmatpush1.bf16.msra.mxu0 %v1205
    %1566 = vmatprep.subr.bf16.mxu0 %v1182
    %1567 = vmatpush1.bf16.msra.mxu0 %v1181
    %1568 = vmatprep.subr.bf16.mxu0 %v1158
    %1569 = vmatpush1.bf16.msra.mxu0 %v1157
    %1570 = vmatprep.subr.bf16.mxu0 %v1134
    %1571 = vmatpush1.bf16.msra.mxu0 %v1133
    %1572 = vmatprep.subr.bf16.mxu0 %v1110
    %1573 = vmatpush1.bf16.msra.mxu0 %v1109
    %1574 = vmatprep.subr.bf16.mxu0 %v1086
    %1575 = vmatpush1.bf16.msra.mxu0 %v1085
    %1576 = vmatprep.subr.bf16.mxu0 %v1062
    %1577 = vmatpush1.bf16.msra.mxu0 %v1061
    %1578 = vmatprep.subr.bf16.mxu0 0
    %1579 = vmatpush2.bf16.msra.mxu0 0
    %1580 = vmatprep.subr.bf16.mxu0 0
    %1581 = vmatpush2.bf16.msra.mxu0 0
    %1582 = vmatprep.subr.bf16.mxu0 0
    %1583 = vmatpush2.bf16.msra.mxu0 0
    %1584 = vmatprep.subr.bf16.mxu0 0
    %1585 = vmatpush2.bf16.msra.mxu0 0
    %1586 = vmatprep.subr.bf16.mxu0 0
    %1587 = vmatpush2.bf16.msra.mxu0 0
    %1588 = vmatprep.subr.bf16.mxu0 0
    %1589 = vmatpush2.bf16.msra.mxu0 0
    %1590 = vmatprep.subr.bf16.mxu0 0
    %1591 = vmatpush2.bf16.msra.mxu0 0
    %1592 = vmatprep.subr.bf16.mxu0 0
    %1593 = vmatpush2.bf16.msra.mxu0 0
    %1594 = vmatprep.mubr.bf16.mxu0 0
    %1595 = vmatmul.mubr.bf16.gmra.mxu0 %v160
    %v1596 = vpop.f32.mrf.mxu0
    %v1597 = vadd.f32 %v386, %v1596
    %v1598 = vpop.f32.mrf.mxu0
    %v1599 = vadd.f32 %v390, %v1598
    %v1600 = vpop.f32.mrf.mxu0
    %v1601 = vpop.f32.mrf.mxu0
    %1602 = vdwg.mxu0
    %1603 = vmatprep.subr.bf16.mxu0 %v1232
    %1604 = vmatpush1.bf16.msra.mxu0 %v1231
    %1605 = vmatprep.subr.bf16.mxu0 %v1208
    %1606 = vmatpush1.bf16.msra.mxu0 %v1207
    %1607 = vmatprep.subr.bf16.mxu0 %v1184
    %1608 = vmatpush1.bf16.msra.mxu0 %v1183
    %1609 = vmatprep.subr.bf16.mxu0 %v1160
    %1610 = vmatpush1.bf16.msra.mxu0 %v1159
    %1611 = vmatprep.subr.bf16.mxu0 %v1136
    %1612 = vmatpush1.bf16.msra.mxu0 %v1135
    %1613 = vmatprep.subr.bf16.mxu0 %v1112
    %1614 = vmatpush1.bf16.msra.mxu0 %v1111
    %1615 = vmatprep.subr.bf16.mxu0 %v1088
    %1616 = vmatpush1.bf16.msra.mxu0 %v1087
    %1617 = vmatprep.subr.bf16.mxu0 %v1064
    %1618 = vmatpush1.bf16.msra.mxu0 %v1063
    %1619 = vmatprep.subr.bf16.mxu0 0
    %1620 = vmatpush2.bf16.msra.mxu0 0
    %1621 = vmatprep.subr.bf16.mxu0 0
    %1622 = vmatpush2.bf16.msra.mxu0 0
    %1623 = vmatprep.subr.bf16.mxu0 0
    %1624 = vmatpush2.bf16.msra.mxu0 0
    %1625 = vmatprep.subr.bf16.mxu0 0
    %1626 = vmatpush2.bf16.msra.mxu0 0
    %1627 = vmatprep.subr.bf16.mxu0 0
    %1628 = vmatpush2.bf16.msra.mxu0 0
    %1629 = vmatprep.subr.bf16.mxu0 0
    %1630 = vmatpush2.bf16.msra.mxu0 0
    %1631 = vmatprep.subr.bf16.mxu0 0
    %1632 = vmatpush2.bf16.msra.mxu0 0
    %1633 = vmatprep.subr.bf16.mxu0 0
    %1634 = vmatpush2.bf16.msra.mxu0 0
    %1635 = vmatprep.mubr.bf16.mxu0 0
    %1636 = vmatmul.mubr.bf16.gmra.mxu0 %v160
    %v1637 = vpop.f32.mrf.mxu0
    %v1638 = vadd.f32 %v394, %v1637
    %v1639 = vpop.f32.mrf.mxu0
    %v1640 = vadd.f32 %v398, %v1639
    %v1641 = vpop.f32.mrf.mxu0
    %v1642 = vpop.f32.mrf.mxu0
    %1643 = vdwg.mxu0
    %1644 = vmatprep.subr.bf16.mxu0 %v1234
    %1645 = vmatpush1.bf16.msra.mxu0 %v1233
    %1646 = vmatprep.subr.bf16.mxu0 %v1210
    %1647 = vmatpush1.bf16.msra.mxu0 %v1209
    %1648 = vmatprep.subr.bf16.mxu0 %v1186
    %1649 = vmatpush1.bf16.msra.mxu0 %v1185
    %1650 = vmatprep.subr.bf16.mxu0 %v1162
    %1651 = vmatpush1.bf16.msra.mxu0 %v1161
    %1652 = vmatprep.subr.bf16.mxu0 %v1138
    %1653 = vmatpush1.bf16.msra.mxu0 %v1137
    %1654 = vmatprep.subr.bf16.mxu0 %v1114
    %1655 = vmatpush1.bf16.msra.mxu0 %v1113
    %1656 = vmatprep.subr.bf16.mxu0 %v1090
    %1657 = vmatpush1.bf16.msra.mxu0 %v1089
    %1658 = vmatprep.subr.bf16.mxu0 %v1066
    %1659 = vmatpush1.bf16.msra.mxu0 %v1065
    %1660 = vmatprep.subr.bf16.mxu0 0
    %1661 = vmatpush2.bf16.msra.mxu0 0
    %1662 = vmatprep.subr.bf16.mxu0 0
    %1663 = vmatpush2.bf16.msra.mxu0 0
    %1664 = vmatprep.subr.bf16.mxu0 0
    %1665 = vmatpush2.bf16.msra.mxu0 0
    %1666 = vmatprep.subr.bf16.mxu0 0
    %1667 = vmatpush2.bf16.msra.mxu0 0
    %1668 = vmatprep.subr.bf16.mxu0 0
    %1669 = vmatpush2.bf16.msra.mxu0 0
    %1670 = vmatprep.subr.bf16.mxu0 0
    %1671 = vmatpush2.bf16.msra.mxu0 0
    %1672 = vmatprep.subr.bf16.mxu0 0
    %1673 = vmatpush2.bf16.msra.mxu0 0
    %1674 = vmatprep.subr.bf16.mxu0 0
    %1675 = vmatpush2.bf16.msra.mxu0 0
    %1676 = vmatprep.mubr.bf16.mxu0 0
    %1677 = vmatmul.mubr.bf16.gmra.mxu0 %v160
    %v1678 = vpop.f32.mrf.mxu0
    %v1679 = vadd.f32 %v402, %v1678
    %v1680 = vpop.f32.mrf.mxu0
    %v1681 = vadd.f32 %v406, %v1680
    %v1682 = vpop.f32.mrf.mxu0
    %v1683 = vpop.f32.mrf.mxu0
    %1684 = vdwg.mxu0
    %1685 = vmatprep.subr.bf16.mxu0 %v1236
    %1686 = vmatpush1.bf16.msra.mxu0 %v1235
    %1687 = vmatprep.subr.bf16.mxu0 %v1212
    %1688 = vmatpush1.bf16.msra.mxu0 %v1211
    %1689 = vmatprep.subr.bf16.mxu0 %v1188
    %1690 = vmatpush1.bf16.msra.mxu0 %v1187
    %1691 = vmatprep.subr.bf16.mxu0 %v1164
    %1692 = vmatpush1.bf16.msra.mxu0 %v1163
    %1693 = vmatprep.subr.bf16.mxu0 %v1140
    %1694 = vmatpush1.bf16.msra.mxu0 %v1139
    %1695 = vmatprep.subr.bf16.mxu0 %v1116
    %1696 = vmatpush1.bf16.msra.mxu0 %v1115
    %1697 = vmatprep.subr.bf16.mxu0 %v1092
    %1698 = vmatpush1.bf16.msra.mxu0 %v1091
    %1699 = vmatprep.subr.bf16.mxu0 %v1068
    %1700 = vmatpush1.bf16.msra.mxu0 %v1067
    %1701 = vmatprep.subr.bf16.mxu0 0
    %1702 = vmatpush2.bf16.msra.mxu0 0
    %1703 = vmatprep.subr.bf16.mxu0 0
    %1704 = vmatpush2.bf16.msra.mxu0 0
    %1705 = vmatprep.subr.bf16.mxu0 0
    %1706 = vmatpush2.bf16.msra.mxu0 0
    %1707 = vmatprep.subr.bf16.mxu0 0
    %1708 = vmatpush2.bf16.msra.mxu0 0
    %1709 = vmatprep.subr.bf16.mxu0 0
    %1710 = vmatpush2.bf16.msra.mxu0 0
    %1711 = vmatprep.subr.bf16.mxu0 0
    %1712 = vmatpush2.bf16.msra.mxu0 0
    %1713 = vmatprep.subr.bf16.mxu0 0
    %1714 = vmatpush2.bf16.msra.mxu0 0
    %1715 = vmatprep.subr.bf16.mxu0 0
    %1716 = vmatpush2.bf16.msra.mxu0 0
    %1717 = vmatprep.mubr.bf16.mxu0 0
    %1718 = vmatmul.mubr.bf16.gmra.mxu0 %v160
    %v1719 = vpop.f32.mrf.mxu0
    %v1720 = vadd.f32 %v410, %v1719
    %v1721 = vpop.f32.mrf.mxu0
    %v1722 = vadd.f32 %v414, %v1721
    %v1723 = vpop.f32.mrf.mxu0
    %v1724 = vpop.f32.mrf.mxu0
    %1725 = vdwg.mxu0
    %1726 = vmatprep.subr.bf16.mxu0 %v1238
    %1727 = vmatpush1.bf16.msra.mxu0 %v1237
    %1728 = vmatprep.subr.bf16.mxu0 %v1214
    %1729 = vmatpush1.bf16.msra.mxu0 %v1213
    %1730 = vmatprep.subr.bf16.mxu0 %v1190
    %1731 = vmatpush1.bf16.msra.mxu0 %v1189
    %1732 = vmatprep.subr.bf16.mxu0 %v1166
    %1733 = vmatpush1.bf16.msra.mxu0 %v1165
    %1734 = vmatprep.subr.bf16.mxu0 %v1142
    %1735 = vmatpush1.bf16.msra.mxu0 %v1141
    %1736 = vmatprep.subr.bf16.mxu0 %v1118
    %1737 = vmatpush1.bf16.msra.mxu0 %v1117
    %1738 = vmatprep.subr.bf16.mxu0 %v1094
    %1739 = vmatpush1.bf16.msra.mxu0 %v1093
    %1740 = vmatprep.subr.bf16.mxu0 %v1070
    %1741 = vmatpush1.bf16.msra.mxu0 %v1069
    %1742 = vmatprep.subr.bf16.mxu0 0
    %1743 = vmatpush2.bf16.msra.mxu0 0
    %1744 = vmatprep.subr.bf16.mxu0 0
    %1745 = vmatpush2.bf16.msra.mxu0 0
    %1746 = vmatprep.subr.bf16.mxu0 0
    %1747 = vmatpush2.bf16.msra.mxu0 0
    %1748 = vmatprep.subr.bf16.mxu0 0
    %1749 = vmatpush2.bf16.msra.mxu0 0
    %1750 = vmatprep.subr.bf16.mxu0 0
    %1751 = vmatpush2.bf16.msra.mxu0 0
    %1752 = vmatprep.subr.bf16.mxu0 0
    %1753 = vmatpush2.bf16.msra.mxu0 0
    %1754 = vmatprep.subr.bf16.mxu0 0
    %1755 = vmatpush2.bf16.msra.mxu0 0
    %1756 = vmatprep.subr.bf16.mxu0 0
    %1757 = vmatpush2.bf16.msra.mxu0 0
    %1758 = vmatprep.mubr.bf16.mxu0 0
    %1759 = vmatmul.mubr.bf16.gmra.mxu0 %v160
    %v1760 = vpop.f32.mrf.mxu0
    %v1761 = vadd.f32 %v418, %v1760
    %v1762 = vpop.f32.mrf.mxu0
    %v1763 = vadd.f32 %v422, %v1762
    %v1764 = vpop.f32.mrf.mxu0
    %v1765 = vpop.f32.mrf.mxu0
    %1766 = vdwg.mxu0
    %1767 = vmatprep.subr.bf16.mxu0 %v1240
    %1768 = vmatpush1.bf16.msra.mxu0 %v1239
    %1769 = vmatprep.subr.bf16.mxu0 %v1216
    %1770 = vmatpush1.bf16.msra.mxu0 %v1215
    %1771 = vmatprep.subr.bf16.mxu0 %v1192
    %1772 = vmatpush1.bf16.msra.mxu0 %v1191
    %1773 = vmatprep.subr.bf16.mxu0 %v1168
    %1774 = vmatpush1.bf16.msra.mxu0 %v1167
    %1775 = vmatprep.subr.bf16.mxu0 %v1144
    %1776 = vmatpush1.bf16.msra.mxu0 %v1143
    %1777 = vmatprep.subr.bf16.mxu0 %v1120
    %1778 = vmatpush1.bf16.msra.mxu0 %v1119
    %1779 = vmatprep.subr.bf16.mxu0 %v1096
    %1780 = vmatpush1.bf16.msra.mxu0 %v1095
    %1781 = vmatprep.subr.bf16.mxu0 %v1072
    %1782 = vmatpush1.bf16.msra.mxu0 %v1071
    %1783 = vmatprep.subr.bf16.mxu0 0
    %1784 = vmatpush2.bf16.msra.mxu0 0
    %1785 = vmatprep.subr.bf16.mxu0 0
    %1786 = vmatpush2.bf16.msra.mxu0 0
    %1787 = vmatprep.subr.bf16.mxu0 0
    %1788 = vmatpush2.bf16.msra.mxu0 0
    %1789 = vmatprep.subr.bf16.mxu0 0
    %1790 = vmatpush2.bf16.msra.mxu0 0
    %1791 = vmatprep.subr.bf16.mxu0 0
    %1792 = vmatpush2.bf16.msra.mxu0 0
    %1793 = vmatprep.subr.bf16.mxu0 0
    %1794 = vmatpush2.bf16.msra.mxu0 0
    %1795 = vmatprep.subr.bf16.mxu0 0
    %1796 = vmatpush2.bf16.msra.mxu0 0
    %1797 = vmatprep.subr.bf16.mxu0 0
    %1798 = vmatpush2.bf16.msra.mxu0 0
    %1799 = vmatprep.mubr.bf16.mxu0 0
    %1800 = vmatmul.mubr.bf16.gmra.mxu0 %v160
    %v1801 = vpop.f32.mrf.mxu0
    %v1802 = vadd.f32 %v426, %v1801
    %v1803 = vpop.f32.mrf.mxu0
    %v1804 = vadd.f32 %v430, %v1803
    %v1805 = vpop.f32.mrf.mxu0
    %v1806 = vpop.f32.mrf.mxu0
    %1807 = vdwg.mxu0
    %1808 = vmatprep.subr.bf16.mxu0 %v1242
    %1809 = vmatpush1.bf16.msra.mxu0 %v1241
    %1810 = vmatprep.subr.bf16.mxu0 %v1218
    %1811 = vmatpush1.bf16.msra.mxu0 %v1217
    %1812 = vmatprep.subr.bf16.mxu0 %v1194
    %1813 = vmatpush1.bf16.msra.mxu0 %v1193
    %1814 = vmatprep.subr.bf16.mxu0 %v1170
    %1815 = vmatpush1.bf16.msra.mxu0 %v1169
    %1816 = vmatprep.subr.bf16.mxu0 %v1146
    %1817 = vmatpush1.bf16.msra.mxu0 %v1145
    %1818 = vmatprep.subr.bf16.mxu0 %v1122
    %1819 = vmatpush1.bf16.msra.mxu0 %v1121
    %1820 = vmatprep.subr.bf16.mxu0 %v1098
    %1821 = vmatpush1.bf16.msra.mxu0 %v1097
    %1822 = vmatprep.subr.bf16.mxu0 %v1074
    %1823 = vmatpush1.bf16.msra.mxu0 %v1073
    %1824 = vmatprep.subr.bf16.mxu0 0
    %1825 = vmatpush2.bf16.msra.mxu0 0
    %1826 = vmatprep.subr.bf16.mxu0 0
    %1827 = vmatpush2.bf16.msra.mxu0 0
    %1828 = vmatprep.subr.bf16.mxu0 0
    %1829 = vmatpush2.bf16.msra.mxu0 0
    %1830 = vmatprep.subr.bf16.mxu0 0
    %1831 = vmatpush2.bf16.msra.mxu0 0
    %1832 = vmatprep.subr.bf16.mxu0 0
    %1833 = vmatpush2.bf16.msra.mxu0 0
    %1834 = vmatprep.subr.bf16.mxu0 0
    %1835 = vmatpush2.bf16.msra.mxu0 0
    %1836 = vmatprep.subr.bf16.mxu0 0
    %1837 = vmatpush2.bf16.msra.mxu0 0
    %1838 = vmatprep.subr.bf16.mxu0 0
    %1839 = vmatpush2.bf16.msra.mxu0 0
    %1840 = vmatprep.mubr.bf16.mxu0 0
    %1841 = vmatmul.mubr.bf16.gmra.mxu0 %v160
    %v1842 = vpop.f32.mrf.mxu0
    %v1843 = vadd.f32 %v434, %v1842
    %v1844 = vpop.f32.mrf.mxu0
    %v1845 = vadd.f32 %v438, %v1844
    %v1846 = vpop.f32.mrf.mxu0
    %v1847 = vpop.f32.mrf.mxu0
    %1848 = vdwg.mxu0
    %1849 = vmatprep.subr.bf16.mxu0 %v1244
    %1850 = vmatpush1.bf16.msra.mxu0 %v1243
    %1851 = vmatprep.subr.bf16.mxu0 %v1220
    %1852 = vmatpush1.bf16.msra.mxu0 %v1219
    %1853 = vmatprep.subr.bf16.mxu0 %v1196
    %1854 = vmatpush1.bf16.msra.mxu0 %v1195
    %1855 = vmatprep.subr.bf16.mxu0 %v1172
    %1856 = vmatpush1.bf16.msra.mxu0 %v1171
    %1857 = vmatprep.subr.bf16.mxu0 %v1148
    %1858 = vmatpush1.bf16.msra.mxu0 %v1147
    %1859 = vmatprep.subr.bf16.mxu0 %v1124
    %1860 = vmatpush1.bf16.msra.mxu0 %v1123
    %1861 = vmatprep.subr.bf16.mxu0 %v1100
    %1862 = vmatpush1.bf16.msra.mxu0 %v1099
    %1863 = vmatprep.subr.bf16.mxu0 %v1076
    %1864 = vmatpush1.bf16.msra.mxu0 %v1075
    %1865 = vmatprep.subr.bf16.mxu0 0
    %1866 = vmatpush2.bf16.msra.mxu0 0
    %1867 = vmatprep.subr.bf16.mxu0 0
    %1868 = vmatpush2.bf16.msra.mxu0 0
    %1869 = vmatprep.subr.bf16.mxu0 0
    %1870 = vmatpush2.bf16.msra.mxu0 0
    %1871 = vmatprep.subr.bf16.mxu0 0
    %1872 = vmatpush2.bf16.msra.mxu0 0
    %1873 = vmatprep.subr.bf16.mxu0 0
    %1874 = vmatpush2.bf16.msra.mxu0 0
    %1875 = vmatprep.subr.bf16.mxu0 0
    %1876 = vmatpush2.bf16.msra.mxu0 0
    %1877 = vmatprep.subr.bf16.mxu0 0
    %1878 = vmatpush2.bf16.msra.mxu0 0
    %1879 = vmatprep.subr.bf16.mxu0 0
    %1880 = vmatpush2.bf16.msra.mxu0 0
    %1881 = vmatprep.mubr.bf16.mxu0 0
    %1882 = vmatmul.mubr.bf16.gmra.mxu0 %v160
    %v1883 = vpop.f32.mrf.mxu0
    %v1884 = vadd.f32 %v442, %v1883
    %v1885 = vpop.f32.mrf.mxu0
    %v1886 = vadd.f32 %v446, %v1885
    %v1887 = vpop.f32.mrf.mxu0
    %v1888 = vpop.f32.mrf.mxu0
    %1889 = vdwg.mxu0
    %1890 = vmatprep.subr.bf16.mxu0 %v1246
    %1891 = vmatpush1.bf16.msra.mxu0 %v1245
    %1892 = vmatprep.subr.bf16.mxu0 %v1222
    %1893 = vmatpush1.bf16.msra.mxu0 %v1221
    %1894 = vmatprep.subr.bf16.mxu0 %v1198
    %1895 = vmatpush1.bf16.msra.mxu0 %v1197
    %1896 = vmatprep.subr.bf16.mxu0 %v1174
    %1897 = vmatpush1.bf16.msra.mxu0 %v1173
    %1898 = vmatprep.subr.bf16.mxu0 %v1150
    %1899 = vmatpush1.bf16.msra.mxu0 %v1149
    %1900 = vmatprep.subr.bf16.mxu0 %v1126
    %1901 = vmatpush1.bf16.msra.mxu0 %v1125
    %1902 = vmatprep.subr.bf16.mxu0 %v1102
    %1903 = vmatpush1.bf16.msra.mxu0 %v1101
    %1904 = vmatprep.subr.bf16.mxu0 %v1078
    %1905 = vmatpush1.bf16.msra.mxu0 %v1077
    %1906 = vmatprep.subr.bf16.mxu0 0
    %1907 = vmatpush2.bf16.msra.mxu0 0
    %1908 = vmatprep.subr.bf16.mxu0 0
    %1909 = vmatpush2.bf16.msra.mxu0 0
    %1910 = vmatprep.subr.bf16.mxu0 0
    %1911 = vmatpush2.bf16.msra.mxu0 0
    %1912 = vmatprep.subr.bf16.mxu0 0
    %1913 = vmatpush2.bf16.msra.mxu0 0
    %1914 = vmatprep.subr.bf16.mxu0 0
    %1915 = vmatpush2.bf16.msra.mxu0 0
    %1916 = vmatprep.subr.bf16.mxu0 0
    %1917 = vmatpush2.bf16.msra.mxu0 0
    %1918 = vmatprep.subr.bf16.mxu0 0
    %1919 = vmatpush2.bf16.msra.mxu0 0
    %1920 = vmatprep.subr.bf16.mxu0 0
    %1921 = vmatpush2.bf16.msra.mxu0 0
    %1922 = vmatprep.mubr.bf16.mxu0 0
    %1923 = vmatmul.mubr.bf16.gmra.mxu0 %v160
    %v1924 = vpop.f32.mrf.mxu0
    %v1925 = vadd.f32 %v450, %v1924
    %v1926 = vpop.f32.mrf.mxu0
    %v1927 = vadd.f32 %v454, %v1926
    %v1928 = vpop.f32.mrf.mxu0
    %v1929 = vpop.f32.mrf.mxu0
    %1930 = vdwg.mxu0
    %v1931 = vtanh.pop %v1474
    %v1932 = vtanh.pop %v1476
    %v1933 = vtanh.pop %v1515
    %v1934 = vtanh.pop %v1517
    %v1935 = vtanh.pop %v1556
    %v1936 = vtanh.pop %v1558
    %v1937 = vtanh.pop %v1597
    %v1938 = vtanh.pop %v1599
    %v1939 = vtanh.pop %v1638
    %v1940 = vtanh.pop %v1640
    %v1941 = vtanh.pop %v1679
    %v1942 = vtanh.pop %v1681
    %v1943 = vtanh.pop %v1720
    %v1944 = vtanh.pop %v1722
    %v1945 = vtanh.pop %v1761
    %v1946 = vtanh.pop %v1763
    %v1947 = vtanh.pop %v1802
    %v1948 = vtanh.pop %v1804
    %v1949 = vtanh.pop %v1843
    %v1950 = vtanh.pop %v1845
    %v1951 = vtanh.pop %v1884
    %v1952 = vtanh.pop %v1886
    %v1953 = vtanh.pop %v1925
    %v1954 = vtanh.pop %v1927
    %v1955 = vpack.c.bf16 %v1931, %v1931
    %v1956 = vpack.c.bf16 %v1932, %v1932
    %v1957 = vpack.c.bf16 %v1933, %v1933
    %v1958 = vpack.c.bf16 %v1934, %v1934
    %v1959 = vpack.c.bf16 %v1935, %v1935
    %v1960 = vpack.c.bf16 %v1936, %v1936
    %v1961 = vpack.c.bf16 %v1937, %v1937
    %v1962 = vpack.c.bf16 %v1938, %v1938
    %v1963 = vpack.c.bf16 %v1939, %v1939
    %v1964 = vpack.c.bf16 %v1940, %v1940
    %v1965 = vpack.c.bf16 %v1941, %v1941
    %v1966 = vpack.c.bf16 %v1942, %v1942
    %v1967 = vpack.c.bf16 %v1943, %v1943
    %v1968 = vpack.c.bf16 %v1944, %v1944
    %v1969 = vpack.c.bf16 %v1945, %v1945
    %v1970 = vpack.c.bf16 %v1946, %v1946
    %v1971 = vpack.c.bf16 %v1947, %v1947
    %v1972 = vpack.c.bf16 %v1948, %v1948
    %v1973 = vpack.c.bf16 %v1949, %v1949
    %v1974 = vpack.c.bf16 %v1950, %v1950
    %v1975 = vpack.c.bf16 %v1951, %v1951
    %v1976 = vpack.c.bf16 %v1952, %v1952
    %v1977 = vpack.c.bf16 %v1953, %v1953
    %v1978 = vpack.c.bf16 %v1954, %v1954
    %v2003 = vunpack.c.l.b16 %v1955
    %v2004 = vunpack.c.l.b16 %v1956
    %v2005 = vunpack.c.l.b16 %v1957
    %v2006 = vunpack.c.l.b16 %v1958
    %v2007 = vunpack.c.l.b16 %v1959
    %v2008 = vunpack.c.l.b16 %v1960
    %v2009 = vunpack.c.l.b16 %v1961
    %v2010 = vunpack.c.l.b16 %v1962
    %v2011 = vunpack.c.l.b16 %v1963
    %v2012 = vunpack.c.l.b16 %v1964
    %v2013 = vunpack.c.l.b16 %v1965
    %v2014 = vunpack.c.l.b16 %v1966
    %v2015 = vunpack.c.l.b16 %v1967
    %v2016 = vunpack.c.l.b16 %v1968
    %v2017 = vunpack.c.l.b16 %v1969
    %v2018 = vunpack.c.l.b16 %v1970
    %v2019 = vunpack.c.l.b16 %v1971
    %v2020 = vunpack.c.l.b16 %v1972
    %v2021 = vunpack.c.l.b16 %v1973
    %v2022 = vunpack.c.l.b16 %v1974
    %v2023 = vunpack.c.l.b16 %v1975
    %v2024 = vunpack.c.l.b16 %v1976
    %v2025 = vunpack.c.l.b16 %v1977
    %v2026 = vunpack.c.l.b16 %v1978
    %v2027 = vpack.c.b16 %v2004, %v2003
    %v2028 = vpack.c.b16 %v2006, %v2005
    %v2029 = vpack.c.b16 %v2008, %v2007
    %v2030 = vpack.c.b16 %v2010, %v2009
    %v2031 = vpack.c.b16 %v2012, %v2011
    %v2032 = vpack.c.b16 %v2014, %v2013
    %v2033 = vpack.c.b16 %v2016, %v2015
    %v2034 = vpack.c.b16 %v2018, %v2017
    %v2035 = vpack.c.b16 %v2020, %v2019
    %v2036 = vpack.c.b16 %v2022, %v2021
    %v2037 = vpack.c.b16 %v2024, %v2023
    %v2038 = vpack.c.b16 %v2026, %v2025
    %2051 = vst [vmem:[#allocation10] sm:$0xff] %v2027
    %2052 = vst [vmem:[#allocation10 + $0x8] sm:$0xff] %v2028
    %2053 = vst [vmem:[#allocation10 + $0x10] sm:$0xff] %v2029
    %2054 = vst [vmem:[#allocation10 + $0x18] sm:$0xff] %v2030
    %2055 = vst [vmem:[#allocation10 + $0x20] sm:$0xff] %v2031
    %2056 = vst [vmem:[#allocation10 + $0x28] sm:$0xff] %v2032
    %2057 = vst [vmem:[#allocation10 + $0x30] sm:$0xff] %v2033
    %2058 = vst [vmem:[#allocation10 + $0x38] sm:$0xff] %v2034
    %2059 = vst [vmem:[#allocation10 + $0x40] sm:$0xff] %v2035
    %2060 = vst [vmem:[#allocation10 + $0x48] sm:$0xff] %v2036
    %2061 = vst [vmem:[#allocation10 + $0x50] sm:$0xff] %v2037
    %2062 = vst [vmem:[#allocation10 + $0x58] sm:$0xff] %v2038
    // Predicated region
    $region38: #{tpu_custom_call.1} parent=1 // pred_check
      _
    $region39: #{tpu_custom_call.1} parent=1 // pred_check_branch
      %2064 = sbr.rel (0) target = $region41
    $region40: #{tpu_custom_call.1} parent=1 // pred_region
      %s2066 = ssub.s32 1536, 1536
      %2067 = vsyncadd [#allocation4], %s2066
      %s2069 = sshll.u32 [#allocation10], 4
      %s2070 = int_to_ptr.vmem [resolvable:$true] %s2069
      %2072 = dma.vmem_to_hbm [thread:$0]  %s2070, 1536, %s5, [#allocation4]
    $region41: #{tpu_custom_call.1} parent=1 // pred_fallthru
      _
    // Predicated region
    $region42: #{tpu_custom_call.1} parent=1 // pred_check
      _
    $region43: #{tpu_custom_call.1} parent=1 // pred_check_branch
      %2074 = sbr.rel (0) target = $region45
    $region44: #{tpu_custom_call.1} parent=1 // pred_region
      %2075 = dma.done [#allocation4], 1536
    $region45: #{tpu_custom_call.1} parent=1 // pred_fallthru
      _
    %2076 = vsyncpa [#allocation3], 1
    %2077 = vsyncpa [#allocation6], 1
    %2078 = vsyncpa [#allocation9], 1
    %2079 = vsyncpa [#allocation4], 1

</llo_original>
